<compile_context>
chip_gen: v7x
topology: tpu7x:2x2x1
jax: 0.10.0
libtpu: 0.0.40
codegen_flags: <defaults>
</compile_context>

<pallas_src>
import jax
import jax.numpy as jnp
from jax import lax
from jax.experimental import pallas as pl
from jax.experimental.pallas import tpu as pltpu

SUB_ROWS = 8    # one f32 vreg = (8 sublanes, 128 lanes)
LANES = 128


def _round_up(a, m):
    return ((a + m - 1) // m) * m


# -----------------------------------------------------------------------------
# VPU path: tiny channel counts (the module's default regime).
# -----------------------------------------------------------------------------
def _make_vpu_mlp_kernel(layer_shapes, n_sub):
    """Per-pixel MLP, fully unrolled on the VPU.

    Kernel refs:
      wf_ref: SMEM f32[sum(co*ci)]  row-major (co, ci) weights, concatenated
      bf_ref: SMEM f32[sum(co)]     biases, concatenated
      x_ref : VMEM (C_in0, tile_rows, 128)
      o_ref : VMEM (tile_rows, 128)
    """
    n_layers = len(layer_shapes)
    c_in0 = layer_shapes[0][1]

    def kernel(wf_ref, bf_ref, x_ref, o_ref):
        # Hoist every scalar weight/bias read (sld) out of the pixel loop so the
        # scalar slots never bottleneck; the VPU does all per-pixel work.
        w_s, b_s = [], []
        w_off = b_off = 0
        for co, ci in layer_shapes:
            w_s.append([[wf_ref[w_off + o * ci + c] for c in range(ci)]
                        for o in range(co)])
            b_s.append([bf_ref[b_off + o] for o in range(co)])
            w_off += co * ci
            b_off += co

        def body(i, carry):
            r0 = pl.multiple_of(i * SUB_ROWS, SUB_ROWS)
            # One (8,128) plane per input channel -> full-vreg VPU operands.
            h = [x_ref[c, pl.ds(r0, SUB_ROWS), :] for c in range(c_in0)]
            for li, (co, ci) in enumerate(layer_shapes):
                nxt = []
                for o in range(co):
                    # Bias folded into the accumulator init: no (co,1) VMEM
                    # operand and no trailing broadcast-add.
                    acc = jnp.full((SUB_ROWS, LANES), b_s[li][o], jnp.float32)
                    for c in range(ci):
                        acc = acc + w_s[li][o][c] * h[c]
                    if li < n_layers - 1:          # ReLU on hidden layers only
                        acc = jnp.maximum(acc, 0.0)
                    nxt.append(acc)
                h = nxt
            o_ref[pl.ds(r0, SUB_ROWS), :] = h[0]   # sublane+lane dense store
            return carry

        lax.fori_loop(0, n_sub, body, 0, unroll=True)

    return kernel


def _plan_rows(P, batch):
    """Choose (padded_rows, tile_rows, n_tiles) for the (rows, 128) pixel layout."""
    rows = _round_up((P + LANES - 1) // LANES, SUB_ROWS)
    if rows <= 64:
        tile_rows = rows
    else:
        tile_rows = max(t for t in range(SUB_ROWS, 72, SUB_ROWS)
                        if t <= 64 and rows % t == 0)
        if tile_rows < 32 and rows > 256:
            # Ragged row counts: pad a little more (<~1% for large P) instead of
            # taking hundreds of tiny grid steps (~0.35us each).
            rows = _round_up(rows, 64)
            tile_rows = 64
    n_tiles = rows // tile_rows
    # Keep the total step count even (when cheap) so both v7x TensorCores work.
    if (batch * n_tiles) % 2 == 1 and tile_rows >= 32 and tile_rows % 16 == 0:
        tile_rows //= 2
        n_tiles = rows // tile_rows
    return rows, tile_rows, n_tiles


def _graphconv_vpu(x_bcp, weights, biases, B, C, P):
    layer_shapes = tuple((int(w.shape[0]), int(w.shape[1])) for w in weights)
    rows, tile_rows, n_tiles = _plan_rows(P, B)
    P_pad = rows * LANES
    if P_pad != P:
        x_bcp = jnp.pad(x_bcp, ((0, 0), (0, 0), (0, P_pad - P)))
    x = x_bcp.reshape(B, C, rows, LANES)

    wf = jnp.concatenate([w.reshape(-1).astype(jnp.float32) for w in weights])
    bf = jnp.concatenate([b.reshape(-1).astype(jnp.float32) for b in biases])

    kernel = _make_vpu_mlp_kernel(layer_shapes, tile_rows // SUB_ROWS)
    smem_spec = pl.BlockSpec(memory_space=pltpu.MemorySpace.SMEM)

    out = pl.pallas_call(
        kernel,
        out_shape=jax.ShapeDtypeStruct((B, rows, LANES), jnp.float32),
        grid_spec=pltpu.PrefetchScalarGridSpec(
            num_scalar_prefetch=0,
            grid=(B, n_tiles),
            in_specs=[
                smem_spec,   # flat weights: SMEM resident, single-buffered
                smem_spec,   # flat biases
                pl.BlockSpec((None, C, tile_rows, LANES),
                             lambda b, p: (b, 0, p, 0)),
            ],
            out_specs=pl.BlockSpec((None, tile_rows, LANES),
                                   lambda b, p: (b, p, 0)),
        ),
        compiler_params=pltpu.CompilerParams(
            dimension_semantics=("parallel", "parallel")),
    )(wf, bf, x)
    return out.reshape(B, P_pad)


# -----------------------------------------------------------------------------
# MXU fallback path: large channel counts (hidden >= ~64).
# -----------------------------------------------------------------------------
def _make_mxu_mlp_kernel(n_layers):
    def kernel(x_ref, *refs):
        o_ref = refs[-1]
        wb = refs[:-1]
        h = x_ref[...].astype(jnp.float32)                 # (C_in, tile_px)
        for i in range(n_layers):
            w = wb[2 * i][...].astype(jnp.float32)         # (C_out, C_in)
            b = wb[2 * i + 1][...].astype(jnp.float32)     # (C_out, 1)
            h = jnp.dot(w, h, preferred_element_type=jnp.float32) + b
            if i < n_layers - 1:
                h = jnp.maximum(h, 0.0)
        o_ref[...] = h.astype(o_ref.dtype)
    return kernel


def _graphconv_mxu(x_bcp, weights, biases, B, C, P):
    n_layers = len(weights)
    max_ch = max([C] + [int(w.shape[0]) for w in weights])
    P_pad = _round_up(P, 1024)
    if P_pad != P:
        x_bcp = jnp.pad(x_bcp, ((0, 0), (0, 0), (0, P_pad - P)))

    # Keep (channel planes) * tile_px * 4 B * 2 buffers under ~8 MiB so the
    # default scoped VMEM (16 MiB v5e / 32 MiB v6e,v7x) is never exceeded.
    budget_px = max(1024, ((8 * 1024 * 1024) // (8 * max(1, max_ch))) // 1024 * 1024)
    target = min(16384, budget_px, P_pad)
    tile_px, t = 1024, 1024
    while t <= target:
        if P_pad % t == 0:
            tile_px = t
        t += 1024
    n_tiles = P_pad // tile_px

    in_specs = [pl.BlockSpec((None, C, tile_px), lambda b, p: (b, 0, p))]
    operands = [x_bcp]
    for w, bias in zip(weights, biases):
        co, ci = int(w.shape[0]), int(w.shape[1])
        # Constant index maps -> weights/biases stay VMEM-resident.
        in_specs.append(pl.BlockSpec((co, ci), lambda b, p: (0, 0)))
        in_specs.append(pl.BlockSpec((co, 1), lambda b, p: (0, 0)))
        operands.append(w.astype(jnp.float32))
        operands.append(bias.astype(jnp.float32))

    out = pl.pallas_call(
        _make_mxu_mlp_kernel(n_layers),
        out_shape=jax.ShapeDtypeStruct((B, 1, P_pad), jnp.float32),
        grid_spec=pltpu.PrefetchScalarGridSpec(
            num_scalar_prefetch=0,
            grid=(B, n_tiles),
            in_specs=in_specs,
            out_specs=pl.BlockSpec((None, 1, tile_px), lambda b, p: (b, 0, p)),
        ),
        compiler_params=pltpu.CompilerParams(
            dimension_semantics=("parallel", "parallel")),
    )(*operands)
    return out.reshape(B, P_pad)


# -----------------------------------------------------------------------------
# Public wrapper (== LinkFunction('graphconv', args).forward)
# -----------------------------------------------------------------------------
def link_function_graphconv(edge_features_nchw, weights, biases):
    """edge_features_nchw: (B, C_in, H, W) f32.
    weights[i]: (C_out_i, C_in_i) == Conv2d.weight[:, :, 0, 0]
    biases[i] : (C_out_i, 1)      == Conv2d.bias[:, None]
    returns (B, H, W) f32         == torch result[:, 0, :, :]
    """
    B, C, H, W = edge_features_nchw.shape
    P = H * W
    n_layers = len(weights)
    assert n_layers >= 1 and len(biases) == n_layers
    assert int(weights[0].shape[1]) == C
    for i in range(1, n_layers):
        assert int(weights[i].shape[1]) == int(weights[i - 1].shape[0])
    for w, b in zip(weights, biases):
        assert b.shape == (int(w.shape[0]), 1)
    assert int(weights[-1].shape[0]) == 1, "final 1x1 conv must have 1 out channel"

    x = edge_features_nchw.reshape(B, C, P).astype(jnp.float32)  # free NCHW view

    macs = sum(int(w.shape[0]) * int(w.shape[1]) for w in weights)
    peak_planes = max(int(w.shape[0]) + int(w.shape[1]) for w in weights)
    if macs <= 4096 and peak_planes <= 56:
        out_flat = _graphconv_vpu(x, weights, biases, B, C, P)   # tiny channels
    else:
        out_flat = _graphconv_mxu(x, weights, biases, B, C, P)   # wide channels
    return out_flat[:, :P].reshape(B, H, W)


def init_graph_conv_params(key, edge_feature_size, link_hidden_size,
                           link_hidden_layers):
    """Synthetic parameters matching init_graph_conv shapes/scaling."""
    weights, biases = [], []
    in_size = edge_feature_size
    sizes = [link_hidden_size] * (link_hidden_layers - 1) + [1]
    for out_size in sizes:
        key, kw, kb = jax.random.split(key, 3)
        bound = 1.0 / jnp.sqrt(in_size)   # torch Conv2d default fan-in scaling
        w = jax.random.uniform(kw, (out_size, in_size), jnp.float32, -bound, bound)
        b = jax.random.uniform(kb, (out_size, 1), jnp.float32, -bound, bound)
        weights.append(w)
        biases.append(b)
        in_size = out_size
    return weights, biases


def _reference(edge_features, weights, biases):
    B, C, H, W = edge_features.shape
    h = edge_features.reshape(B, C, H * W).astype(jnp.float32)
    for i, (w, b) in enumerate(zip(weights, biases)):
        h = jnp.einsum('oc,bcp->bop', w, h) + b[None, :, :]
        if i < len(weights) - 1:
            h = jnp.maximum(h, 0.0)
    return h[:, 0, :].reshape(B, H, W)


if __name__ == "__main__":
    key = jax.random.PRNGKey(0)

    # Default config: edge_feature_size=4, link_hidden_size=32,
    # link_hidden_layers=2, 16-node graph, batch 2.  (VPU path)
    k_x, k_p, key = jax.random.split(key, 3)
    x1 = jax.random.normal(k_x, (2, 4, 16, 16), jnp.float32)
    w1, b1 = init_graph_conv_params(k_p, 4, 32, 2)
    out1 = jax.block_until_ready(link_function_graphconv(x1, w1, b1))
    assert out1.shape == (2, 16, 16)
    assert jnp.allclose(out1, _reference(x1, w1, b1), atol=1e-5, rtol=1e-5)

    # Ragged pixel count (P=144 not a multiple of 128) + 3 layers (VPU path,
    # exercises padding / tail handling).
    k_x, k_p, key = jax.random.split(key, 3)
    x2 = jax.random.normal(k_x, (1, 4, 12, 12), jnp.float32)
    w2, b2 = init_graph_conv_params(k_p, 4, 16, 3)
    out2 = jax.block_until_ready(link_function_graphconv(x2, w2, b2))
    assert out2.shape == (1, 12, 12)
    assert jnp.allclose(out2, _reference(x2, w2, b2), atol=1e-5, rtol=1e-5)

    # Wider hidden layer: exercises the MXU fallback path.
    k_x, k_p, key = jax.random.split(key, 3)
    x3 = jax.random.normal(k_x, (2, 4, 16, 16), jnp.float32)
    w3, b3 = init_graph_conv_params(k_p, 4, 96, 2)
    out3 = jax.block_until_ready(link_function_graphconv(x3, w3, b3))
    assert out3.shape == (2, 16, 16)
    assert jnp.allclose(out3, _reference(x3, w3, b3), atol=1e-4, rtol=1e-4)

    print("KERNEL_OK")
</pallas_src>

<mosaic_0001>
module attributes {stable_mosaic.version = 11 : i64} {
  func.func @kernel(%arg0: i32, %arg1: i32, %arg2: memref<160xf32, #tpu.memory_space<smem>>, %arg3: memref<33xf32, #tpu.memory_space<smem>>, %arg4: memref<1x4x8x128xf32, #tpu.memory_space<vmem>>, %arg5: memref<1x8x128xf32, #tpu.memory_space<vmem>>) attributes {dimension_semantics = [#tpu.dimension_semantics<parallel>, #tpu.dimension_semantics<parallel>], iteration_bounds = array<i64: 2, 1>, scalar_prefetch = 0 : i64, scratch_operands = 0 : i64, tpu.core_type = #tpu.core_type<tc>, window_params = [{transform_indices = @transform_0, window_bounds = array<i64: 160>}, {transform_indices = @transform_1, window_bounds = array<i64: 33>}, {transform_indices = @transform_2, window_bounds = array<i64: 1, 4, 8, 128>}, {transform_indices = @transform_3, window_bounds = array<i64: 1, 8, 128>}]} {
    %c0 = arith.constant 0 : index
    %0 = memref.load %arg2[%c0] : memref<160xf32, #tpu.memory_space<smem>>
    %c1 = arith.constant 1 : index
    %1 = memref.load %arg2[%c1] : memref<160xf32, #tpu.memory_space<smem>>
    %c2 = arith.constant 2 : index
    %2 = memref.load %arg2[%c2] : memref<160xf32, #tpu.memory_space<smem>>
    %c3 = arith.constant 3 : index
    %3 = memref.load %arg2[%c3] : memref<160xf32, #tpu.memory_space<smem>>
    %c4 = arith.constant 4 : index
    %4 = memref.load %arg2[%c4] : memref<160xf32, #tpu.memory_space<smem>>
    %c5 = arith.constant 5 : index
    %5 = memref.load %arg2[%c5] : memref<160xf32, #tpu.memory_space<smem>>
    %c6 = arith.constant 6 : index
    %6 = memref.load %arg2[%c6] : memref<160xf32, #tpu.memory_space<smem>>
    %c7 = arith.constant 7 : index
    %7 = memref.load %arg2[%c7] : memref<160xf32, #tpu.memory_space<smem>>
    %c8 = arith.constant 8 : index
    %8 = memref.load %arg2[%c8] : memref<160xf32, #tpu.memory_space<smem>>
    %c9 = arith.constant 9 : index
    %9 = memref.load %arg2[%c9] : memref<160xf32, #tpu.memory_space<smem>>
    %c10 = arith.constant 10 : index
    %10 = memref.load %arg2[%c10] : memref<160xf32, #tpu.memory_space<smem>>
    %c11 = arith.constant 11 : index
    %11 = memref.load %arg2[%c11] : memref<160xf32, #tpu.memory_space<smem>>
    %c12 = arith.constant 12 : index
    %12 = memref.load %arg2[%c12] : memref<160xf32, #tpu.memory_space<smem>>
    %c13 = arith.constant 13 : index
    %13 = memref.load %arg2[%c13] : memref<160xf32, #tpu.memory_space<smem>>
    %c14 = arith.constant 14 : index
    %14 = memref.load %arg2[%c14] : memref<160xf32, #tpu.memory_space<smem>>
    %c15 = arith.constant 15 : index
    %15 = memref.load %arg2[%c15] : memref<160xf32, #tpu.memory_space<smem>>
    %c16 = arith.constant 16 : index
    %16 = memref.load %arg2[%c16] : memref<160xf32, #tpu.memory_space<smem>>
    %c17 = arith.constant 17 : index
    %17 = memref.load %arg2[%c17] : memref<160xf32, #tpu.memory_space<smem>>
    %c18 = arith.constant 18 : index
    %18 = memref.load %arg2[%c18] : memref<160xf32, #tpu.memory_space<smem>>
    %c19 = arith.constant 19 : index
    %19 = memref.load %arg2[%c19] : memref<160xf32, #tpu.memory_space<smem>>
    %c20 = arith.constant 20 : index
    %20 = memref.load %arg2[%c20] : memref<160xf32, #tpu.memory_space<smem>>
    %c21 = arith.constant 21 : index
    %21 = memref.load %arg2[%c21] : memref<160xf32, #tpu.memory_space<smem>>
    %c22 = arith.constant 22 : index
    %22 = memref.load %arg2[%c22] : memref<160xf32, #tpu.memory_space<smem>>
    %c23 = arith.constant 23 : index
    %23 = memref.load %arg2[%c23] : memref<160xf32, #tpu.memory_space<smem>>
    %c24 = arith.constant 24 : index
    %24 = memref.load %arg2[%c24] : memref<160xf32, #tpu.memory_space<smem>>
    %c25 = arith.constant 25 : index
    %25 = memref.load %arg2[%c25] : memref<160xf32, #tpu.memory_space<smem>>
    %c26 = arith.constant 26 : index
    %26 = memref.load %arg2[%c26] : memref<160xf32, #tpu.memory_space<smem>>
    %c27 = arith.constant 27 : index
    %27 = memref.load %arg2[%c27] : memref<160xf32, #tpu.memory_space<smem>>
    %c28 = arith.constant 28 : index
    %28 = memref.load %arg2[%c28] : memref<160xf32, #tpu.memory_space<smem>>
    %c29 = arith.constant 29 : index
    %29 = memref.load %arg2[%c29] : memref<160xf32, #tpu.memory_space<smem>>
    %c30 = arith.constant 30 : index
    %30 = memref.load %arg2[%c30] : memref<160xf32, #tpu.memory_space<smem>>
    %c31 = arith.constant 31 : index
    %31 = memref.load %arg2[%c31] : memref<160xf32, #tpu.memory_space<smem>>
    %c32 = arith.constant 32 : index
    %32 = memref.load %arg2[%c32] : memref<160xf32, #tpu.memory_space<smem>>
    %c33 = arith.constant 33 : index
    %33 = memref.load %arg2[%c33] : memref<160xf32, #tpu.memory_space<smem>>
    %c34 = arith.constant 34 : index
    %34 = memref.load %arg2[%c34] : memref<160xf32, #tpu.memory_space<smem>>
    %c35 = arith.constant 35 : index
    %35 = memref.load %arg2[%c35] : memref<160xf32, #tpu.memory_space<smem>>
    %c36 = arith.constant 36 : index
    %36 = memref.load %arg2[%c36] : memref<160xf32, #tpu.memory_space<smem>>
    %c37 = arith.constant 37 : index
    %37 = memref.load %arg2[%c37] : memref<160xf32, #tpu.memory_space<smem>>
    %c38 = arith.constant 38 : index
    %38 = memref.load %arg2[%c38] : memref<160xf32, #tpu.memory_space<smem>>
    %c39 = arith.constant 39 : index
    %39 = memref.load %arg2[%c39] : memref<160xf32, #tpu.memory_space<smem>>
    %c40 = arith.constant 40 : index
    %40 = memref.load %arg2[%c40] : memref<160xf32, #tpu.memory_space<smem>>
    %c41 = arith.constant 41 : index
    %41 = memref.load %arg2[%c41] : memref<160xf32, #tpu.memory_space<smem>>
    %c42 = arith.constant 42 : index
    %42 = memref.load %arg2[%c42] : memref<160xf32, #tpu.memory_space<smem>>
    %c43 = arith.constant 43 : index
    %43 = memref.load %arg2[%c43] : memref<160xf32, #tpu.memory_space<smem>>
    %c44 = arith.constant 44 : index
    %44 = memref.load %arg2[%c44] : memref<160xf32, #tpu.memory_space<smem>>
    %c45 = arith.constant 45 : index
    %45 = memref.load %arg2[%c45] : memref<160xf32, #tpu.memory_space<smem>>
    %c46 = arith.constant 46 : index
    %46 = memref.load %arg2[%c46] : memref<160xf32, #tpu.memory_space<smem>>
    %c47 = arith.constant 47 : index
    %47 = memref.load %arg2[%c47] : memref<160xf32, #tpu.memory_space<smem>>
    %c48 = arith.constant 48 : index
    %48 = memref.load %arg2[%c48] : memref<160xf32, #tpu.memory_space<smem>>
    %c49 = arith.constant 49 : index
    %49 = memref.load %arg2[%c49] : memref<160xf32, #tpu.memory_space<smem>>
    %c50 = arith.constant 50 : index
    %50 = memref.load %arg2[%c50] : memref<160xf32, #tpu.memory_space<smem>>
    %c51 = arith.constant 51 : index
    %51 = memref.load %arg2[%c51] : memref<160xf32, #tpu.memory_space<smem>>
    %c52 = arith.constant 52 : index
    %52 = memref.load %arg2[%c52] : memref<160xf32, #tpu.memory_space<smem>>
    %c53 = arith.constant 53 : index
    %53 = memref.load %arg2[%c53] : memref<160xf32, #tpu.memory_space<smem>>
    %c54 = arith.constant 54 : index
    %54 = memref.load %arg2[%c54] : memref<160xf32, #tpu.memory_space<smem>>
    %c55 = arith.constant 55 : index
    %55 = memref.load %arg2[%c55] : memref<160xf32, #tpu.memory_space<smem>>
    %c56 = arith.constant 56 : index
    %56 = memref.load %arg2[%c56] : memref<160xf32, #tpu.memory_space<smem>>
    %c57 = arith.constant 57 : index
    %57 = memref.load %arg2[%c57] : memref<160xf32, #tpu.memory_space<smem>>
    %c58 = arith.constant 58 : index
    %58 = memref.load %arg2[%c58] : memref<160xf32, #tpu.memory_space<smem>>
    %c59 = arith.constant 59 : index
    %59 = memref.load %arg2[%c59] : memref<160xf32, #tpu.memory_space<smem>>
    %c60 = arith.constant 60 : index
    %60 = memref.load %arg2[%c60] : memref<160xf32, #tpu.memory_space<smem>>
    %c61 = arith.constant 61 : index
    %61 = memref.load %arg2[%c61] : memref<160xf32, #tpu.memory_space<smem>>
    %c62 = arith.constant 62 : index
    %62 = memref.load %arg2[%c62] : memref<160xf32, #tpu.memory_space<smem>>
    %c63 = arith.constant 63 : index
    %63 = memref.load %arg2[%c63] : memref<160xf32, #tpu.memory_space<smem>>
    %c64 = arith.constant 64 : index
    %64 = memref.load %arg2[%c64] : memref<160xf32, #tpu.memory_space<smem>>
    %c65 = arith.constant 65 : index
    %65 = memref.load %arg2[%c65] : memref<160xf32, #tpu.memory_space<smem>>
    %c66 = arith.constant 66 : index
    %66 = memref.load %arg2[%c66] : memref<160xf32, #tpu.memory_space<smem>>
    %c67 = arith.constant 67 : index
    %67 = memref.load %arg2[%c67] : memref<160xf32, #tpu.memory_space<smem>>
    %c68 = arith.constant 68 : index
    %68 = memref.load %arg2[%c68] : memref<160xf32, #tpu.memory_space<smem>>
    %c69 = arith.constant 69 : index
    %69 = memref.load %arg2[%c69] : memref<160xf32, #tpu.memory_space<smem>>
    %c70 = arith.constant 70 : index
    %70 = memref.load %arg2[%c70] : memref<160xf32, #tpu.memory_space<smem>>
    %c71 = arith.constant 71 : index
    %71 = memref.load %arg2[%c71] : memref<160xf32, #tpu.memory_space<smem>>
    %c72 = arith.constant 72 : index
    %72 = memref.load %arg2[%c72] : memref<160xf32, #tpu.memory_space<smem>>
    %c73 = arith.constant 73 : index
    %73 = memref.load %arg2[%c73] : memref<160xf32, #tpu.memory_space<smem>>
    %c74 = arith.constant 74 : index
    %74 = memref.load %arg2[%c74] : memref<160xf32, #tpu.memory_space<smem>>
    %c75 = arith.constant 75 : index
    %75 = memref.load %arg2[%c75] : memref<160xf32, #tpu.memory_space<smem>>
    %c76 = arith.constant 76 : index
    %76 = memref.load %arg2[%c76] : memref<160xf32, #tpu.memory_space<smem>>
    %c77 = arith.constant 77 : index
    %77 = memref.load %arg2[%c77] : memref<160xf32, #tpu.memory_space<smem>>
    %c78 = arith.constant 78 : index
    %78 = memref.load %arg2[%c78] : memref<160xf32, #tpu.memory_space<smem>>
    %c79 = arith.constant 79 : index
    %79 = memref.load %arg2[%c79] : memref<160xf32, #tpu.memory_space<smem>>
    %c80 = arith.constant 80 : index
    %80 = memref.load %arg2[%c80] : memref<160xf32, #tpu.memory_space<smem>>
    %c81 = arith.constant 81 : index
    %81 = memref.load %arg2[%c81] : memref<160xf32, #tpu.memory_space<smem>>
    %c82 = arith.constant 82 : index
    %82 = memref.load %arg2[%c82] : memref<160xf32, #tpu.memory_space<smem>>
    %c83 = arith.constant 83 : index
    %83 = memref.load %arg2[%c83] : memref<160xf32, #tpu.memory_space<smem>>
    %c84 = arith.constant 84 : index
    %84 = memref.load %arg2[%c84] : memref<160xf32, #tpu.memory_space<smem>>
    %c85 = arith.constant 85 : index
    %85 = memref.load %arg2[%c85] : memref<160xf32, #tpu.memory_space<smem>>
    %c86 = arith.constant 86 : index
    %86 = memref.load %arg2[%c86] : memref<160xf32, #tpu.memory_space<smem>>
    %c87 = arith.constant 87 : index
    %87 = memref.load %arg2[%c87] : memref<160xf32, #tpu.memory_space<smem>>
    %c88 = arith.constant 88 : index
    %88 = memref.load %arg2[%c88] : memref<160xf32, #tpu.memory_space<smem>>
    %c89 = arith.constant 89 : index
    %89 = memref.load %arg2[%c89] : memref<160xf32, #tpu.memory_space<smem>>
    %c90 = arith.constant 90 : index
    %90 = memref.load %arg2[%c90] : memref<160xf32, #tpu.memory_space<smem>>
    %c91 = arith.constant 91 : index
    %91 = memref.load %arg2[%c91] : memref<160xf32, #tpu.memory_space<smem>>
    %c92 = arith.constant 92 : index
    %92 = memref.load %arg2[%c92] : memref<160xf32, #tpu.memory_space<smem>>
    %c93 = arith.constant 93 : index
    %93 = memref.load %arg2[%c93] : memref<160xf32, #tpu.memory_space<smem>>
    %c94 = arith.constant 94 : index
    %94 = memref.load %arg2[%c94] : memref<160xf32, #tpu.memory_space<smem>>
    %c95 = arith.constant 95 : index
    %95 = memref.load %arg2[%c95] : memref<160xf32, #tpu.memory_space<smem>>
    %c96 = arith.constant 96 : index
    %96 = memref.load %arg2[%c96] : memref<160xf32, #tpu.memory_space<smem>>
    %c97 = arith.constant 97 : index
    %97 = memref.load %arg2[%c97] : memref<160xf32, #tpu.memory_space<smem>>
    %c98 = arith.constant 98 : index
    %98 = memref.load %arg2[%c98] : memref<160xf32, #tpu.memory_space<smem>>
    %c99 = arith.constant 99 : index
    %99 = memref.load %arg2[%c99] : memref<160xf32, #tpu.memory_space<smem>>
    %c100 = arith.constant 100 : index
    %100 = memref.load %arg2[%c100] : memref<160xf32, #tpu.memory_space<smem>>
    %c101 = arith.constant 101 : index
    %101 = memref.load %arg2[%c101] : memref<160xf32, #tpu.memory_space<smem>>
    %c102 = arith.constant 102 : index
    %102 = memref.load %arg2[%c102] : memref<160xf32, #tpu.memory_space<smem>>
    %c103 = arith.constant 103 : index
    %103 = memref.load %arg2[%c103] : memref<160xf32, #tpu.memory_space<smem>>
    %c104 = arith.constant 104 : index
    %104 = memref.load %arg2[%c104] : memref<160xf32, #tpu.memory_space<smem>>
    %c105 = arith.constant 105 : index
    %105 = memref.load %arg2[%c105] : memref<160xf32, #tpu.memory_space<smem>>
    %c106 = arith.constant 106 : index
    %106 = memref.load %arg2[%c106] : memref<160xf32, #tpu.memory_space<smem>>
    %c107 = arith.constant 107 : index
    %107 = memref.load %arg2[%c107] : memref<160xf32, #tpu.memory_space<smem>>
    %c108 = arith.constant 108 : index
    %108 = memref.load %arg2[%c108] : memref<160xf32, #tpu.memory_space<smem>>
    %c109 = arith.constant 109 : index
    %109 = memref.load %arg2[%c109] : memref<160xf32, #tpu.memory_space<smem>>
    %c110 = arith.constant 110 : index
    %110 = memref.load %arg2[%c110] : memref<160xf32, #tpu.memory_space<smem>>
    %c111 = arith.constant 111 : index
    %111 = memref.load %arg2[%c111] : memref<160xf32, #tpu.memory_space<smem>>
    %c112 = arith.constant 112 : index
    %112 = memref.load %arg2[%c112] : memref<160xf32, #tpu.memory_space<smem>>
    %c113 = arith.constant 113 : index
    %113 = memref.load %arg2[%c113] : memref<160xf32, #tpu.memory_space<smem>>
    %c114 = arith.constant 114 : index
    %114 = memref.load %arg2[%c114] : memref<160xf32, #tpu.memory_space<smem>>
    %c115 = arith.constant 115 : index
    %115 = memref.load %arg2[%c115] : memref<160xf32, #tpu.memory_space<smem>>
    %c116 = arith.constant 116 : index
    %116 = memref.load %arg2[%c116] : memref<160xf32, #tpu.memory_space<smem>>
    %c117 = arith.constant 117 : index
    %117 = memref.load %arg2[%c117] : memref<160xf32, #tpu.memory_space<smem>>
    %c118 = arith.constant 118 : index
    %118 = memref.load %arg2[%c118] : memref<160xf32, #tpu.memory_space<smem>>
    %c119 = arith.constant 119 : index
    %119 = memref.load %arg2[%c119] : memref<160xf32, #tpu.memory_space<smem>>
    %c120 = arith.constant 120 : index
    %120 = memref.load %arg2[%c120] : memref<160xf32, #tpu.memory_space<smem>>
    %c121 = arith.constant 121 : index
    %121 = memref.load %arg2[%c121] : memref<160xf32, #tpu.memory_space<smem>>
    %c122 = arith.constant 122 : index
    %122 = memref.load %arg2[%c122] : memref<160xf32, #tpu.memory_space<smem>>
    %c123 = arith.constant 123 : index
    %123 = memref.load %arg2[%c123] : memref<160xf32, #tpu.memory_space<smem>>
    %c124 = arith.constant 124 : index
    %124 = memref.load %arg2[%c124] : memref<160xf32, #tpu.memory_space<smem>>
    %c125 = arith.constant 125 : index
    %125 = memref.load %arg2[%c125] : memref<160xf32, #tpu.memory_space<smem>>
    %c126 = arith.constant 126 : index
    %126 = memref.load %arg2[%c126] : memref<160xf32, #tpu.memory_space<smem>>
    %c127 = arith.constant 127 : index
    %127 = memref.load %arg2[%c127] : memref<160xf32, #tpu.memory_space<smem>>
    %c0_0 = arith.constant 0 : index
    %128 = memref.load %arg3[%c0_0] : memref<33xf32, #tpu.memory_space<smem>>
    %c1_1 = arith.constant 1 : index
    %129 = memref.load %arg3[%c1_1] : memref<33xf32, #tpu.memory_space<smem>>
    %c2_2 = arith.constant 2 : index
    %130 = memref.load %arg3[%c2_2] : memref<33xf32, #tpu.memory_space<smem>>
    %c3_3 = arith.constant 3 : index
    %131 = memref.load %arg3[%c3_3] : memref<33xf32, #tpu.memory_space<smem>>
    %c4_4 = arith.constant 4 : index
    %132 = memref.load %arg3[%c4_4] : memref<33xf32, #tpu.memory_space<smem>>
    %c5_5 = arith.constant 5 : index
    %133 = memref.load %arg3[%c5_5] : memref<33xf32, #tpu.memory_space<smem>>
    %c6_6 = arith.constant 6 : index
    %134 = memref.load %arg3[%c6_6] : memref<33xf32, #tpu.memory_space<smem>>
    %c7_7 = arith.constant 7 : index
    %135 = memref.load %arg3[%c7_7] : memref<33xf32, #tpu.memory_space<smem>>
    %c8_8 = arith.constant 8 : index
    %136 = memref.load %arg3[%c8_8] : memref<33xf32, #tpu.memory_space<smem>>
    %c9_9 = arith.constant 9 : index
    %137 = memref.load %arg3[%c9_9] : memref<33xf32, #tpu.memory_space<smem>>
    %c10_10 = arith.constant 10 : index
    %138 = memref.load %arg3[%c10_10] : memref<33xf32, #tpu.memory_space<smem>>
    %c11_11 = arith.constant 11 : index
    %139 = memref.load %arg3[%c11_11] : memref<33xf32, #tpu.memory_space<smem>>
    %c12_12 = arith.constant 12 : index
    %140 = memref.load %arg3[%c12_12] : memref<33xf32, #tpu.memory_space<smem>>
    %c13_13 = arith.constant 13 : index
    %141 = memref.load %arg3[%c13_13] : memref<33xf32, #tpu.memory_space<smem>>
    %c14_14 = arith.constant 14 : index
    %142 = memref.load %arg3[%c14_14] : memref<33xf32, #tpu.memory_space<smem>>
    %c15_15 = arith.constant 15 : index
    %143 = memref.load %arg3[%c15_15] : memref<33xf32, #tpu.memory_space<smem>>
    %c16_16 = arith.constant 16 : index
    %144 = memref.load %arg3[%c16_16] : memref<33xf32, #tpu.memory_space<smem>>
    %c17_17 = arith.constant 17 : index
    %145 = memref.load %arg3[%c17_17] : memref<33xf32, #tpu.memory_space<smem>>
    %c18_18 = arith.constant 18 : index
    %146 = memref.load %arg3[%c18_18] : memref<33xf32, #tpu.memory_space<smem>>
    %c19_19 = arith.constant 19 : index
    %147 = memref.load %arg3[%c19_19] : memref<33xf32, #tpu.memory_space<smem>>
    %c20_20 = arith.constant 20 : index
    %148 = memref.load %arg3[%c20_20] : memref<33xf32, #tpu.memory_space<smem>>
    %c21_21 = arith.constant 21 : index
    %149 = memref.load %arg3[%c21_21] : memref<33xf32, #tpu.memory_space<smem>>
    %c22_22 = arith.constant 22 : index
    %150 = memref.load %arg3[%c22_22] : memref<33xf32, #tpu.memory_space<smem>>
    %c23_23 = arith.constant 23 : index
    %151 = memref.load %arg3[%c23_23] : memref<33xf32, #tpu.memory_space<smem>>
    %c24_24 = arith.constant 24 : index
    %152 = memref.load %arg3[%c24_24] : memref<33xf32, #tpu.memory_space<smem>>
    %c25_25 = arith.constant 25 : index
    %153 = memref.load %arg3[%c25_25] : memref<33xf32, #tpu.memory_space<smem>>
    %c26_26 = arith.constant 26 : index
    %154 = memref.load %arg3[%c26_26] : memref<33xf32, #tpu.memory_space<smem>>
    %c27_27 = arith.constant 27 : index
    %155 = memref.load %arg3[%c27_27] : memref<33xf32, #tpu.memory_space<smem>>
    %c28_28 = arith.constant 28 : index
    %156 = memref.load %arg3[%c28_28] : memref<33xf32, #tpu.memory_space<smem>>
    %c29_29 = arith.constant 29 : index
    %157 = memref.load %arg3[%c29_29] : memref<33xf32, #tpu.memory_space<smem>>
    %c30_30 = arith.constant 30 : index
    %158 = memref.load %arg3[%c30_30] : memref<33xf32, #tpu.memory_space<smem>>
    %c31_31 = arith.constant 31 : index
    %159 = memref.load %arg3[%c31_31] : memref<33xf32, #tpu.memory_space<smem>>
    %c128 = arith.constant 128 : index
    %160 = memref.load %arg2[%c128] : memref<160xf32, #tpu.memory_space<smem>>
    %c129 = arith.constant 129 : index
    %161 = memref.load %arg2[%c129] : memref<160xf32, #tpu.memory_space<smem>>
    %c130 = arith.constant 130 : index
    %162 = memref.load %arg2[%c130] : memref<160xf32, #tpu.memory_space<smem>>
    %c131 = arith.constant 131 : index
    %163 = memref.load %arg2[%c131] : memref<160xf32, #tpu.memory_space<smem>>
    %c132 = arith.constant 132 : index
    %164 = memref.load %arg2[%c132] : memref<160xf32, #tpu.memory_space<smem>>
    %c133 = arith.constant 133 : index
    %165 = memref.load %arg2[%c133] : memref<160xf32, #tpu.memory_space<smem>>
    %c134 = arith.constant 134 : index
    %166 = memref.load %arg2[%c134] : memref<160xf32, #tpu.memory_space<smem>>
    %c135 = arith.constant 135 : index
    %167 = memref.load %arg2[%c135] : memref<160xf32, #tpu.memory_space<smem>>
    %c136 = arith.constant 136 : index
    %168 = memref.load %arg2[%c136] : memref<160xf32, #tpu.memory_space<smem>>
    %c137 = arith.constant 137 : index
    %169 = memref.load %arg2[%c137] : memref<160xf32, #tpu.memory_space<smem>>
    %c138 = arith.constant 138 : index
    %170 = memref.load %arg2[%c138] : memref<160xf32, #tpu.memory_space<smem>>
    %c139 = arith.constant 139 : index
    %171 = memref.load %arg2[%c139] : memref<160xf32, #tpu.memory_space<smem>>
    %c140 = arith.constant 140 : index
    %172 = memref.load %arg2[%c140] : memref<160xf32, #tpu.memory_space<smem>>
    %c141 = arith.constant 141 : index
    %173 = memref.load %arg2[%c141] : memref<160xf32, #tpu.memory_space<smem>>
    %c142 = arith.constant 142 : index
    %174 = memref.load %arg2[%c142] : memref<160xf32, #tpu.memory_space<smem>>
    %c143 = arith.constant 143 : index
    %175 = memref.load %arg2[%c143] : memref<160xf32, #tpu.memory_space<smem>>
    %c144 = arith.constant 144 : index
    %176 = memref.load %arg2[%c144] : memref<160xf32, #tpu.memory_space<smem>>
    %c145 = arith.constant 145 : index
    %177 = memref.load %arg2[%c145] : memref<160xf32, #tpu.memory_space<smem>>
    %c146 = arith.constant 146 : index
    %178 = memref.load %arg2[%c146] : memref<160xf32, #tpu.memory_space<smem>>
    %c147 = arith.constant 147 : index
    %179 = memref.load %arg2[%c147] : memref<160xf32, #tpu.memory_space<smem>>
    %c148 = arith.constant 148 : index
    %180 = memref.load %arg2[%c148] : memref<160xf32, #tpu.memory_space<smem>>
    %c149 = arith.constant 149 : index
    %181 = memref.load %arg2[%c149] : memref<160xf32, #tpu.memory_space<smem>>
    %c150 = arith.constant 150 : index
    %182 = memref.load %arg2[%c150] : memref<160xf32, #tpu.memory_space<smem>>
    %c151 = arith.constant 151 : index
    %183 = memref.load %arg2[%c151] : memref<160xf32, #tpu.memory_space<smem>>
    %c152 = arith.constant 152 : index
    %184 = memref.load %arg2[%c152] : memref<160xf32, #tpu.memory_space<smem>>
    %c153 = arith.constant 153 : index
    %185 = memref.load %arg2[%c153] : memref<160xf32, #tpu.memory_space<smem>>
    %c154 = arith.constant 154 : index
    %186 = memref.load %arg2[%c154] : memref<160xf32, #tpu.memory_space<smem>>
    %c155 = arith.constant 155 : index
    %187 = memref.load %arg2[%c155] : memref<160xf32, #tpu.memory_space<smem>>
    %c156 = arith.constant 156 : index
    %188 = memref.load %arg2[%c156] : memref<160xf32, #tpu.memory_space<smem>>
    %c157 = arith.constant 157 : index
    %189 = memref.load %arg2[%c157] : memref<160xf32, #tpu.memory_space<smem>>
    %c158 = arith.constant 158 : index
    %190 = memref.load %arg2[%c158] : memref<160xf32, #tpu.memory_space<smem>>
    %c159 = arith.constant 159 : index
    %191 = memref.load %arg2[%c159] : memref<160xf32, #tpu.memory_space<smem>>
    %c32_32 = arith.constant 32 : index
    %192 = memref.load %arg3[%c32_32] : memref<33xf32, #tpu.memory_space<smem>>
    %c0_i32 = arith.constant 0 : i32
    %c8_i32 = arith.constant 8 : i32
    %193 = arith.muli %c0_i32, %c8_i32 : i32
    %194 = tpu.assume_multiple %193, 8 : i32
    %c0_33 = arith.constant 0 : index
    %c0_34 = arith.constant 0 : index
    %195 = arith.index_cast %194 : i32 to index
    %c0_35 = arith.constant 0 : index
    %196 = vector.load %arg4[%c0_33, %c0_34, %195, %c0_35] : memref<1x4x8x128xf32, #tpu.memory_space<vmem>>, vector<1x1x8x128xf32>
    %197 = vector.shape_cast %196 : vector<1x1x8x128xf32> to vector<8x128xf32>
    %c0_36 = arith.constant 0 : index
    %c1_37 = arith.constant 1 : index
    %198 = arith.index_cast %194 : i32 to index
    %c0_38 = arith.constant 0 : index
    %199 = vector.load %arg4[%c0_36, %c1_37, %198, %c0_38] : memref<1x4x8x128xf32, #tpu.memory_space<vmem>>, vector<1x1x8x128xf32>
    %200 = vector.shape_cast %199 : vector<1x1x8x128xf32> to vector<8x128xf32>
    %c0_39 = arith.constant 0 : index
    %c2_40 = arith.constant 2 : index
    %201 = arith.index_cast %194 : i32 to index
    %c0_41 = arith.constant 0 : index
    %202 = vector.load %arg4[%c0_39, %c2_40, %201, %c0_41] : memref<1x4x8x128xf32, #tpu.memory_space<vmem>>, vector<1x1x8x128xf32>
    %203 = vector.shape_cast %202 : vector<1x1x8x128xf32> to vector<8x128xf32>
    %c0_42 = arith.constant 0 : index
    %c3_43 = arith.constant 3 : index
    %204 = arith.index_cast %194 : i32 to index
    %c0_44 = arith.constant 0 : index
    %205 = vector.load %arg4[%c0_42, %c3_43, %204, %c0_44] : memref<1x4x8x128xf32, #tpu.memory_space<vmem>>, vector<1x1x8x128xf32>
    %206 = vector.shape_cast %205 : vector<1x1x8x128xf32> to vector<8x128xf32>
    %207 = vector.broadcast %128 : f32 to vector<8x128xf32>
    %208 = vector.broadcast %0 : f32 to vector<8x128xf32>
    %209 = arith.mulf %208, %197 : vector<8x128xf32>
    %210 = arith.addf %207, %209 : vector<8x128xf32>
    %211 = vector.broadcast %1 : f32 to vector<8x128xf32>
    %212 = arith.mulf %211, %200 : vector<8x128xf32>
    %213 = arith.addf %210, %212 : vector<8x128xf32>
    %214 = vector.broadcast %2 : f32 to vector<8x128xf32>
    %215 = arith.mulf %214, %203 : vector<8x128xf32>
    %216 = arith.addf %213, %215 : vector<8x128xf32>
    %217 = vector.broadcast %3 : f32 to vector<8x128xf32>
    %218 = arith.mulf %217, %206 : vector<8x128xf32>
    %219 = arith.addf %216, %218 : vector<8x128xf32>
    %cst = arith.constant 0.000000e+00 : f32
    %220 = vector.broadcast %cst : f32 to vector<8x128xf32>
    %221 = arith.maximumf %219, %220 : vector<8x128xf32>
    %222 = vector.broadcast %129 : f32 to vector<8x128xf32>
    %223 = vector.broadcast %4 : f32 to vector<8x128xf32>
    %224 = arith.mulf %223, %197 : vector<8x128xf32>
    %225 = arith.addf %222, %224 : vector<8x128xf32>
    %226 = vector.broadcast %5 : f32 to vector<8x128xf32>
    %227 = arith.mulf %226, %200 : vector<8x128xf32>
    %228 = arith.addf %225, %227 : vector<8x128xf32>
    %229 = vector.broadcast %6 : f32 to vector<8x128xf32>
    %230 = arith.mulf %229, %203 : vector<8x128xf32>
    %231 = arith.addf %228, %230 : vector<8x128xf32>
    %232 = vector.broadcast %7 : f32 to vector<8x128xf32>
    %233 = arith.mulf %232, %206 : vector<8x128xf32>
    %234 = arith.addf %231, %233 : vector<8x128xf32>
    %cst_45 = arith.constant 0.000000e+00 : f32
    %235 = vector.broadcast %cst_45 : f32 to vector<8x128xf32>
    %236 = arith.maximumf %234, %235 : vector<8x128xf32>
    %237 = vector.broadcast %130 : f32 to vector<8x128xf32>
    %238 = vector.broadcast %8 : f32 to vector<8x128xf32>
    %239 = arith.mulf %238, %197 : vector<8x128xf32>
    %240 = arith.addf %237, %239 : vector<8x128xf32>
    %241 = vector.broadcast %9 : f32 to vector<8x128xf32>
    %242 = arith.mulf %241, %200 : vector<8x128xf32>
    %243 = arith.addf %240, %242 : vector<8x128xf32>
    %244 = vector.broadcast %10 : f32 to vector<8x128xf32>
    %245 = arith.mulf %244, %203 : vector<8x128xf32>
    %246 = arith.addf %243, %245 : vector<8x128xf32>
    %247 = vector.broadcast %11 : f32 to vector<8x128xf32>
    %248 = arith.mulf %247, %206 : vector<8x128xf32>
    %249 = arith.addf %246, %248 : vector<8x128xf32>
    %cst_46 = arith.constant 0.000000e+00 : f32
    %250 = vector.broadcast %cst_46 : f32 to vector<8x128xf32>
    %251 = arith.maximumf %249, %250 : vector<8x128xf32>
    %252 = vector.broadcast %131 : f32 to vector<8x128xf32>
    %253 = vector.broadcast %12 : f32 to vector<8x128xf32>
    %254 = arith.mulf %253, %197 : vector<8x128xf32>
    %255 = arith.addf %252, %254 : vector<8x128xf32>
    %256 = vector.broadcast %13 : f32 to vector<8x128xf32>
    %257 = arith.mulf %256, %200 : vector<8x128xf32>
    %258 = arith.addf %255, %257 : vector<8x128xf32>
    %259 = vector.broadcast %14 : f32 to vector<8x128xf32>
    %260 = arith.mulf %259, %203 : vector<8x128xf32>
    %261 = arith.addf %258, %260 : vector<8x128xf32>
    %262 = vector.broadcast %15 : f32 to vector<8x128xf32>
    %263 = arith.mulf %262, %206 : vector<8x128xf32>
    %264 = arith.addf %261, %263 : vector<8x128xf32>
    %cst_47 = arith.constant 0.000000e+00 : f32
    %265 = vector.broadcast %cst_47 : f32 to vector<8x128xf32>
    %266 = arith.maximumf %264, %265 : vector<8x128xf32>
    %267 = vector.broadcast %132 : f32 to vector<8x128xf32>
    %268 = vector.broadcast %16 : f32 to vector<8x128xf32>
    %269 = arith.mulf %268, %197 : vector<8x128xf32>
    %270 = arith.addf %267, %269 : vector<8x128xf32>
    %271 = vector.broadcast %17 : f32 to vector<8x128xf32>
    %272 = arith.mulf %271, %200 : vector<8x128xf32>
    %273 = arith.addf %270, %272 : vector<8x128xf32>
    %274 = vector.broadcast %18 : f32 to vector<8x128xf32>
    %275 = arith.mulf %274, %203 : vector<8x128xf32>
    %276 = arith.addf %273, %275 : vector<8x128xf32>
    %277 = vector.broadcast %19 : f32 to vector<8x128xf32>
    %278 = arith.mulf %277, %206 : vector<8x128xf32>
    %279 = arith.addf %276, %278 : vector<8x128xf32>
    %cst_48 = arith.constant 0.000000e+00 : f32
    %280 = vector.broadcast %cst_48 : f32 to vector<8x128xf32>
    %281 = arith.maximumf %279, %280 : vector<8x128xf32>
    %282 = vector.broadcast %133 : f32 to vector<8x128xf32>
    %283 = vector.broadcast %20 : f32 to vector<8x128xf32>
    %284 = arith.mulf %283, %197 : vector<8x128xf32>
    %285 = arith.addf %282, %284 : vector<8x128xf32>
    %286 = vector.broadcast %21 : f32 to vector<8x128xf32>
    %287 = arith.mulf %286, %200 : vector<8x128xf32>
    %288 = arith.addf %285, %287 : vector<8x128xf32>
    %289 = vector.broadcast %22 : f32 to vector<8x128xf32>
    %290 = arith.mulf %289, %203 : vector<8x128xf32>
    %291 = arith.addf %288, %290 : vector<8x128xf32>
    %292 = vector.broadcast %23 : f32 to vector<8x128xf32>
    %293 = arith.mulf %292, %206 : vector<8x128xf32>
    %294 = arith.addf %291, %293 : vector<8x128xf32>
    %cst_49 = arith.constant 0.000000e+00 : f32
    %295 = vector.broadcast %cst_49 : f32 to vector<8x128xf32>
    %296 = arith.maximumf %294, %295 : vector<8x128xf32>
    %297 = vector.broadcast %134 : f32 to vector<8x128xf32>
    %298 = vector.broadcast %24 : f32 to vector<8x128xf32>
    %299 = arith.mulf %298, %197 : vector<8x128xf32>
    %300 = arith.addf %297, %299 : vector<8x128xf32>
    %301 = vector.broadcast %25 : f32 to vector<8x128xf32>
    %302 = arith.mulf %301, %200 : vector<8x128xf32>
    %303 = arith.addf %300, %302 : vector<8x128xf32>
    %304 = vector.broadcast %26 : f32 to vector<8x128xf32>
    %305 = arith.mulf %304, %203 : vector<8x128xf32>
    %306 = arith.addf %303, %305 : vector<8x128xf32>
    %307 = vector.broadcast %27 : f32 to vector<8x128xf32>
    %308 = arith.mulf %307, %206 : vector<8x128xf32>
    %309 = arith.addf %306, %308 : vector<8x128xf32>
    %cst_50 = arith.constant 0.000000e+00 : f32
    %310 = vector.broadcast %cst_50 : f32 to vector<8x128xf32>
    %311 = arith.maximumf %309, %310 : vector<8x128xf32>
    %312 = vector.broadcast %135 : f32 to vector<8x128xf32>
    %313 = vector.broadcast %28 : f32 to vector<8x128xf32>
    %314 = arith.mulf %313, %197 : vector<8x128xf32>
    %315 = arith.addf %312, %314 : vector<8x128xf32>
    %316 = vector.broadcast %29 : f32 to vector<8x128xf32>
    %317 = arith.mulf %316, %200 : vector<8x128xf32>
    %318 = arith.addf %315, %317 : vector<8x128xf32>
    %319 = vector.broadcast %30 : f32 to vector<8x128xf32>
    %320 = arith.mulf %319, %203 : vector<8x128xf32>
    %321 = arith.addf %318, %320 : vector<8x128xf32>
    %322 = vector.broadcast %31 : f32 to vector<8x128xf32>
    %323 = arith.mulf %322, %206 : vector<8x128xf32>
    %324 = arith.addf %321, %323 : vector<8x128xf32>
    %cst_51 = arith.constant 0.000000e+00 : f32
    %325 = vector.broadcast %cst_51 : f32 to vector<8x128xf32>
    %326 = arith.maximumf %324, %325 : vector<8x128xf32>
    %327 = vector.broadcast %136 : f32 to vector<8x128xf32>
    %328 = vector.broadcast %32 : f32 to vector<8x128xf32>
    %329 = arith.mulf %328, %197 : vector<8x128xf32>
    %330 = arith.addf %327, %329 : vector<8x128xf32>
    %331 = vector.broadcast %33 : f32 to vector<8x128xf32>
    %332 = arith.mulf %331, %200 : vector<8x128xf32>
    %333 = arith.addf %330, %332 : vector<8x128xf32>
    %334 = vector.broadcast %34 : f32 to vector<8x128xf32>
    %335 = arith.mulf %334, %203 : vector<8x128xf32>
    %336 = arith.addf %333, %335 : vector<8x128xf32>
    %337 = vector.broadcast %35 : f32 to vector<8x128xf32>
    %338 = arith.mulf %337, %206 : vector<8x128xf32>
    %339 = arith.addf %336, %338 : vector<8x128xf32>
    %cst_52 = arith.constant 0.000000e+00 : f32
    %340 = vector.broadcast %cst_52 : f32 to vector<8x128xf32>
    %341 = arith.maximumf %339, %340 : vector<8x128xf32>
    %342 = vector.broadcast %137 : f32 to vector<8x128xf32>
    %343 = vector.broadcast %36 : f32 to vector<8x128xf32>
    %344 = arith.mulf %343, %197 : vector<8x128xf32>
    %345 = arith.addf %342, %344 : vector<8x128xf32>
    %346 = vector.broadcast %37 : f32 to vector<8x128xf32>
    %347 = arith.mulf %346, %200 : vector<8x128xf32>
    %348 = arith.addf %345, %347 : vector<8x128xf32>
    %349 = vector.broadcast %38 : f32 to vector<8x128xf32>
    %350 = arith.mulf %349, %203 : vector<8x128xf32>
    %351 = arith.addf %348, %350 : vector<8x128xf32>
    %352 = vector.broadcast %39 : f32 to vector<8x128xf32>
    %353 = arith.mulf %352, %206 : vector<8x128xf32>
    %354 = arith.addf %351, %353 : vector<8x128xf32>
    %cst_53 = arith.constant 0.000000e+00 : f32
    %355 = vector.broadcast %cst_53 : f32 to vector<8x128xf32>
    %356 = arith.maximumf %354, %355 : vector<8x128xf32>
    %357 = vector.broadcast %138 : f32 to vector<8x128xf32>
    %358 = vector.broadcast %40 : f32 to vector<8x128xf32>
    %359 = arith.mulf %358, %197 : vector<8x128xf32>
    %360 = arith.addf %357, %359 : vector<8x128xf32>
    %361 = vector.broadcast %41 : f32 to vector<8x128xf32>
    %362 = arith.mulf %361, %200 : vector<8x128xf32>
    %363 = arith.addf %360, %362 : vector<8x128xf32>
    %364 = vector.broadcast %42 : f32 to vector<8x128xf32>
    %365 = arith.mulf %364, %203 : vector<8x128xf32>
    %366 = arith.addf %363, %365 : vector<8x128xf32>
    %367 = vector.broadcast %43 : f32 to vector<8x128xf32>
    %368 = arith.mulf %367, %206 : vector<8x128xf32>
    %369 = arith.addf %366, %368 : vector<8x128xf32>
    %cst_54 = arith.constant 0.000000e+00 : f32
    %370 = vector.broadcast %cst_54 : f32 to vector<8x128xf32>
    %371 = arith.maximumf %369, %370 : vector<8x128xf32>
    %372 = vector.broadcast %139 : f32 to vector<8x128xf32>
    %373 = vector.broadcast %44 : f32 to vector<8x128xf32>
    %374 = arith.mulf %373, %197 : vector<8x128xf32>
    %375 = arith.addf %372, %374 : vector<8x128xf32>
    %376 = vector.broadcast %45 : f32 to vector<8x128xf32>
    %377 = arith.mulf %376, %200 : vector<8x128xf32>
    %378 = arith.addf %375, %377 : vector<8x128xf32>
    %379 = vector.broadcast %46 : f32 to vector<8x128xf32>
    %380 = arith.mulf %379, %203 : vector<8x128xf32>
    %381 = arith.addf %378, %380 : vector<8x128xf32>
    %382 = vector.broadcast %47 : f32 to vector<8x128xf32>
    %383 = arith.mulf %382, %206 : vector<8x128xf32>
    %384 = arith.addf %381, %383 : vector<8x128xf32>
    %cst_55 = arith.constant 0.000000e+00 : f32
    %385 = vector.broadcast %cst_55 : f32 to vector<8x128xf32>
    %386 = arith.maximumf %384, %385 : vector<8x128xf32>
    %387 = vector.broadcast %140 : f32 to vector<8x128xf32>
    %388 = vector.broadcast %48 : f32 to vector<8x128xf32>
    %389 = arith.mulf %388, %197 : vector<8x128xf32>
    %390 = arith.addf %387, %389 : vector<8x128xf32>
    %391 = vector.broadcast %49 : f32 to vector<8x128xf32>
    %392 = arith.mulf %391, %200 : vector<8x128xf32>
    %393 = arith.addf %390, %392 : vector<8x128xf32>
    %394 = vector.broadcast %50 : f32 to vector<8x128xf32>
    %395 = arith.mulf %394, %203 : vector<8x128xf32>
    %396 = arith.addf %393, %395 : vector<8x128xf32>
    %397 = vector.broadcast %51 : f32 to vector<8x128xf32>
    %398 = arith.mulf %397, %206 : vector<8x128xf32>
    %399 = arith.addf %396, %398 : vector<8x128xf32>
    %cst_56 = arith.constant 0.000000e+00 : f32
    %400 = vector.broadcast %cst_56 : f32 to vector<8x128xf32>
    %401 = arith.maximumf %399, %400 : vector<8x128xf32>
    %402 = vector.broadcast %141 : f32 to vector<8x128xf32>
    %403 = vector.broadcast %52 : f32 to vector<8x128xf32>
    %404 = arith.mulf %403, %197 : vector<8x128xf32>
    %405 = arith.addf %402, %404 : vector<8x128xf32>
    %406 = vector.broadcast %53 : f32 to vector<8x128xf32>
    %407 = arith.mulf %406, %200 : vector<8x128xf32>
    %408 = arith.addf %405, %407 : vector<8x128xf32>
    %409 = vector.broadcast %54 : f32 to vector<8x128xf32>
    %410 = arith.mulf %409, %203 : vector<8x128xf32>
    %411 = arith.addf %408, %410 : vector<8x128xf32>
    %412 = vector.broadcast %55 : f32 to vector<8x128xf32>
    %413 = arith.mulf %412, %206 : vector<8x128xf32>
    %414 = arith.addf %411, %413 : vector<8x128xf32>
    %cst_57 = arith.constant 0.000000e+00 : f32
    %415 = vector.broadcast %cst_57 : f32 to vector<8x128xf32>
    %416 = arith.maximumf %414, %415 : vector<8x128xf32>
    %417 = vector.broadcast %142 : f32 to vector<8x128xf32>
    %418 = vector.broadcast %56 : f32 to vector<8x128xf32>
    %419 = arith.mulf %418, %197 : vector<8x128xf32>
    %420 = arith.addf %417, %419 : vector<8x128xf32>
    %421 = vector.broadcast %57 : f32 to vector<8x128xf32>
    %422 = arith.mulf %421, %200 : vector<8x128xf32>
    %423 = arith.addf %420, %422 : vector<8x128xf32>
    %424 = vector.broadcast %58 : f32 to vector<8x128xf32>
    %425 = arith.mulf %424, %203 : vector<8x128xf32>
    %426 = arith.addf %423, %425 : vector<8x128xf32>
    %427 = vector.broadcast %59 : f32 to vector<8x128xf32>
    %428 = arith.mulf %427, %206 : vector<8x128xf32>
    %429 = arith.addf %426, %428 : vector<8x128xf32>
    %cst_58 = arith.constant 0.000000e+00 : f32
    %430 = vector.broadcast %cst_58 : f32 to vector<8x128xf32>
    %431 = arith.maximumf %429, %430 : vector<8x128xf32>
    %432 = vector.broadcast %143 : f32 to vector<8x128xf32>
    %433 = vector.broadcast %60 : f32 to vector<8x128xf32>
    %434 = arith.mulf %433, %197 : vector<8x128xf32>
    %435 = arith.addf %432, %434 : vector<8x128xf32>
    %436 = vector.broadcast %61 : f32 to vector<8x128xf32>
    %437 = arith.mulf %436, %200 : vector<8x128xf32>
    %438 = arith.addf %435, %437 : vector<8x128xf32>
    %439 = vector.broadcast %62 : f32 to vector<8x128xf32>
    %440 = arith.mulf %439, %203 : vector<8x128xf32>
    %441 = arith.addf %438, %440 : vector<8x128xf32>
    %442 = vector.broadcast %63 : f32 to vector<8x128xf32>
    %443 = arith.mulf %442, %206 : vector<8x128xf32>
    %444 = arith.addf %441, %443 : vector<8x128xf32>
    %cst_59 = arith.constant 0.000000e+00 : f32
    %445 = vector.broadcast %cst_59 : f32 to vector<8x128xf32>
    %446 = arith.maximumf %444, %445 : vector<8x128xf32>
    %447 = vector.broadcast %144 : f32 to vector<8x128xf32>
    %448 = vector.broadcast %64 : f32 to vector<8x128xf32>
    %449 = arith.mulf %448, %197 : vector<8x128xf32>
    %450 = arith.addf %447, %449 : vector<8x128xf32>
    %451 = vector.broadcast %65 : f32 to vector<8x128xf32>
    %452 = arith.mulf %451, %200 : vector<8x128xf32>
    %453 = arith.addf %450, %452 : vector<8x128xf32>
    %454 = vector.broadcast %66 : f32 to vector<8x128xf32>
    %455 = arith.mulf %454, %203 : vector<8x128xf32>
    %456 = arith.addf %453, %455 : vector<8x128xf32>
    %457 = vector.broadcast %67 : f32 to vector<8x128xf32>
    %458 = arith.mulf %457, %206 : vector<8x128xf32>
    %459 = arith.addf %456, %458 : vector<8x128xf32>
    %cst_60 = arith.constant 0.000000e+00 : f32
    %460 = vector.broadcast %cst_60 : f32 to vector<8x128xf32>
    %461 = arith.maximumf %459, %460 : vector<8x128xf32>
    %462 = vector.broadcast %145 : f32 to vector<8x128xf32>
    %463 = vector.broadcast %68 : f32 to vector<8x128xf32>
    %464 = arith.mulf %463, %197 : vector<8x128xf32>
    %465 = arith.addf %462, %464 : vector<8x128xf32>
    %466 = vector.broadcast %69 : f32 to vector<8x128xf32>
    %467 = arith.mulf %466, %200 : vector<8x128xf32>
    %468 = arith.addf %465, %467 : vector<8x128xf32>
    %469 = vector.broadcast %70 : f32 to vector<8x128xf32>
    %470 = arith.mulf %469, %203 : vector<8x128xf32>
    %471 = arith.addf %468, %470 : vector<8x128xf32>
    %472 = vector.broadcast %71 : f32 to vector<8x128xf32>
    %473 = arith.mulf %472, %206 : vector<8x128xf32>
    %474 = arith.addf %471, %473 : vector<8x128xf32>
    %cst_61 = arith.constant 0.000000e+00 : f32
    %475 = vector.broadcast %cst_61 : f32 to vector<8x128xf32>
    %476 = arith.maximumf %474, %475 : vector<8x128xf32>
    %477 = vector.broadcast %146 : f32 to vector<8x128xf32>
    %478 = vector.broadcast %72 : f32 to vector<8x128xf32>
    %479 = arith.mulf %478, %197 : vector<8x128xf32>
    %480 = arith.addf %477, %479 : vector<8x128xf32>
    %481 = vector.broadcast %73 : f32 to vector<8x128xf32>
    %482 = arith.mulf %481, %200 : vector<8x128xf32>
    %483 = arith.addf %480, %482 : vector<8x128xf32>
    %484 = vector.broadcast %74 : f32 to vector<8x128xf32>
    %485 = arith.mulf %484, %203 : vector<8x128xf32>
    %486 = arith.addf %483, %485 : vector<8x128xf32>
    %487 = vector.broadcast %75 : f32 to vector<8x128xf32>
    %488 = arith.mulf %487, %206 : vector<8x128xf32>
    %489 = arith.addf %486, %488 : vector<8x128xf32>
    %cst_62 = arith.constant 0.000000e+00 : f32
    %490 = vector.broadcast %cst_62 : f32 to vector<8x128xf32>
    %491 = arith.maximumf %489, %490 : vector<8x128xf32>
    %492 = vector.broadcast %147 : f32 to vector<8x128xf32>
    %493 = vector.broadcast %76 : f32 to vector<8x128xf32>
    %494 = arith.mulf %493, %197 : vector<8x128xf32>
    %495 = arith.addf %492, %494 : vector<8x128xf32>
    %496 = vector.broadcast %77 : f32 to vector<8x128xf32>
    %497 = arith.mulf %496, %200 : vector<8x128xf32>
    %498 = arith.addf %495, %497 : vector<8x128xf32>
    %499 = vector.broadcast %78 : f32 to vector<8x128xf32>
    %500 = arith.mulf %499, %203 : vector<8x128xf32>
    %501 = arith.addf %498, %500 : vector<8x128xf32>
    %502 = vector.broadcast %79 : f32 to vector<8x128xf32>
    %503 = arith.mulf %502, %206 : vector<8x128xf32>
    %504 = arith.addf %501, %503 : vector<8x128xf32>
    %cst_63 = arith.constant 0.000000e+00 : f32
    %505 = vector.broadcast %cst_63 : f32 to vector<8x128xf32>
    %506 = arith.maximumf %504, %505 : vector<8x128xf32>
    %507 = vector.broadcast %148 : f32 to vector<8x128xf32>
    %508 = vector.broadcast %80 : f32 to vector<8x128xf32>
    %509 = arith.mulf %508, %197 : vector<8x128xf32>
    %510 = arith.addf %507, %509 : vector<8x128xf32>
    %511 = vector.broadcast %81 : f32 to vector<8x128xf32>
    %512 = arith.mulf %511, %200 : vector<8x128xf32>
    %513 = arith.addf %510, %512 : vector<8x128xf32>
    %514 = vector.broadcast %82 : f32 to vector<8x128xf32>
    %515 = arith.mulf %514, %203 : vector<8x128xf32>
    %516 = arith.addf %513, %515 : vector<8x128xf32>
    %517 = vector.broadcast %83 : f32 to vector<8x128xf32>
    %518 = arith.mulf %517, %206 : vector<8x128xf32>
    %519 = arith.addf %516, %518 : vector<8x128xf32>
    %cst_64 = arith.constant 0.000000e+00 : f32
    %520 = vector.broadcast %cst_64 : f32 to vector<8x128xf32>
    %521 = arith.maximumf %519, %520 : vector<8x128xf32>
    %522 = vector.broadcast %149 : f32 to vector<8x128xf32>
    %523 = vector.broadcast %84 : f32 to vector<8x128xf32>
    %524 = arith.mulf %523, %197 : vector<8x128xf32>
    %525 = arith.addf %522, %524 : vector<8x128xf32>
    %526 = vector.broadcast %85 : f32 to vector<8x128xf32>
    %527 = arith.mulf %526, %200 : vector<8x128xf32>
    %528 = arith.addf %525, %527 : vector<8x128xf32>
    %529 = vector.broadcast %86 : f32 to vector<8x128xf32>
    %530 = arith.mulf %529, %203 : vector<8x128xf32>
    %531 = arith.addf %528, %530 : vector<8x128xf32>
    %532 = vector.broadcast %87 : f32 to vector<8x128xf32>
    %533 = arith.mulf %532, %206 : vector<8x128xf32>
    %534 = arith.addf %531, %533 : vector<8x128xf32>
    %cst_65 = arith.constant 0.000000e+00 : f32
    %535 = vector.broadcast %cst_65 : f32 to vector<8x128xf32>
    %536 = arith.maximumf %534, %535 : vector<8x128xf32>
    %537 = vector.broadcast %150 : f32 to vector<8x128xf32>
    %538 = vector.broadcast %88 : f32 to vector<8x128xf32>
    %539 = arith.mulf %538, %197 : vector<8x128xf32>
    %540 = arith.addf %537, %539 : vector<8x128xf32>
    %541 = vector.broadcast %89 : f32 to vector<8x128xf32>
    %542 = arith.mulf %541, %200 : vector<8x128xf32>
    %543 = arith.addf %540, %542 : vector<8x128xf32>
    %544 = vector.broadcast %90 : f32 to vector<8x128xf32>
    %545 = arith.mulf %544, %203 : vector<8x128xf32>
    %546 = arith.addf %543, %545 : vector<8x128xf32>
    %547 = vector.broadcast %91 : f32 to vector<8x128xf32>
    %548 = arith.mulf %547, %206 : vector<8x128xf32>
    %549 = arith.addf %546, %548 : vector<8x128xf32>
    %cst_66 = arith.constant 0.000000e+00 : f32
    %550 = vector.broadcast %cst_66 : f32 to vector<8x128xf32>
    %551 = arith.maximumf %549, %550 : vector<8x128xf32>
    %552 = vector.broadcast %151 : f32 to vector<8x128xf32>
    %553 = vector.broadcast %92 : f32 to vector<8x128xf32>
    %554 = arith.mulf %553, %197 : vector<8x128xf32>
    %555 = arith.addf %552, %554 : vector<8x128xf32>
    %556 = vector.broadcast %93 : f32 to vector<8x128xf32>
    %557 = arith.mulf %556, %200 : vector<8x128xf32>
    %558 = arith.addf %555, %557 : vector<8x128xf32>
    %559 = vector.broadcast %94 : f32 to vector<8x128xf32>
    %560 = arith.mulf %559, %203 : vector<8x128xf32>
    %561 = arith.addf %558, %560 : vector<8x128xf32>
    %562 = vector.broadcast %95 : f32 to vector<8x128xf32>
    %563 = arith.mulf %562, %206 : vector<8x128xf32>
    %564 = arith.addf %561, %563 : vector<8x128xf32>
    %cst_67 = arith.constant 0.000000e+00 : f32
    %565 = vector.broadcast %cst_67 : f32 to vector<8x128xf32>
    %566 = arith.maximumf %564, %565 : vector<8x128xf32>
    %567 = vector.broadcast %152 : f32 to vector<8x128xf32>
    %568 = vector.broadcast %96 : f32 to vector<8x128xf32>
    %569 = arith.mulf %568, %197 : vector<8x128xf32>
    %570 = arith.addf %567, %569 : vector<8x128xf32>
    %571 = vector.broadcast %97 : f32 to vector<8x128xf32>
    %572 = arith.mulf %571, %200 : vector<8x128xf32>
    %573 = arith.addf %570, %572 : vector<8x128xf32>
    %574 = vector.broadcast %98 : f32 to vector<8x128xf32>
    %575 = arith.mulf %574, %203 : vector<8x128xf32>
    %576 = arith.addf %573, %575 : vector<8x128xf32>
    %577 = vector.broadcast %99 : f32 to vector<8x128xf32>
    %578 = arith.mulf %577, %206 : vector<8x128xf32>
    %579 = arith.addf %576, %578 : vector<8x128xf32>
    %cst_68 = arith.constant 0.000000e+00 : f32
    %580 = vector.broadcast %cst_68 : f32 to vector<8x128xf32>
    %581 = arith.maximumf %579, %580 : vector<8x128xf32>
    %582 = vector.broadcast %153 : f32 to vector<8x128xf32>
    %583 = vector.broadcast %100 : f32 to vector<8x128xf32>
    %584 = arith.mulf %583, %197 : vector<8x128xf32>
    %585 = arith.addf %582, %584 : vector<8x128xf32>
    %586 = vector.broadcast %101 : f32 to vector<8x128xf32>
    %587 = arith.mulf %586, %200 : vector<8x128xf32>
    %588 = arith.addf %585, %587 : vector<8x128xf32>
    %589 = vector.broadcast %102 : f32 to vector<8x128xf32>
    %590 = arith.mulf %589, %203 : vector<8x128xf32>
    %591 = arith.addf %588, %590 : vector<8x128xf32>
    %592 = vector.broadcast %103 : f32 to vector<8x128xf32>
    %593 = arith.mulf %592, %206 : vector<8x128xf32>
    %594 = arith.addf %591, %593 : vector<8x128xf32>
    %cst_69 = arith.constant 0.000000e+00 : f32
    %595 = vector.broadcast %cst_69 : f32 to vector<8x128xf32>
    %596 = arith.maximumf %594, %595 : vector<8x128xf32>
    %597 = vector.broadcast %154 : f32 to vector<8x128xf32>
    %598 = vector.broadcast %104 : f32 to vector<8x128xf32>
    %599 = arith.mulf %598, %197 : vector<8x128xf32>
    %600 = arith.addf %597, %599 : vector<8x128xf32>
    %601 = vector.broadcast %105 : f32 to vector<8x128xf32>
    %602 = arith.mulf %601, %200 : vector<8x128xf32>
    %603 = arith.addf %600, %602 : vector<8x128xf32>
    %604 = vector.broadcast %106 : f32 to vector<8x128xf32>
    %605 = arith.mulf %604, %203 : vector<8x128xf32>
    %606 = arith.addf %603, %605 : vector<8x128xf32>
    %607 = vector.broadcast %107 : f32 to vector<8x128xf32>
    %608 = arith.mulf %607, %206 : vector<8x128xf32>
    %609 = arith.addf %606, %608 : vector<8x128xf32>
    %cst_70 = arith.constant 0.000000e+00 : f32
    %610 = vector.broadcast %cst_70 : f32 to vector<8x128xf32>
    %611 = arith.maximumf %609, %610 : vector<8x128xf32>
    %612 = vector.broadcast %155 : f32 to vector<8x128xf32>
    %613 = vector.broadcast %108 : f32 to vector<8x128xf32>
    %614 = arith.mulf %613, %197 : vector<8x128xf32>
    %615 = arith.addf %612, %614 : vector<8x128xf32>
    %616 = vector.broadcast %109 : f32 to vector<8x128xf32>
    %617 = arith.mulf %616, %200 : vector<8x128xf32>
    %618 = arith.addf %615, %617 : vector<8x128xf32>
    %619 = vector.broadcast %110 : f32 to vector<8x128xf32>
    %620 = arith.mulf %619, %203 : vector<8x128xf32>
    %621 = arith.addf %618, %620 : vector<8x128xf32>
    %622 = vector.broadcast %111 : f32 to vector<8x128xf32>
    %623 = arith.mulf %622, %206 : vector<8x128xf32>
    %624 = arith.addf %621, %623 : vector<8x128xf32>
    %cst_71 = arith.constant 0.000000e+00 : f32
    %625 = vector.broadcast %cst_71 : f32 to vector<8x128xf32>
    %626 = arith.maximumf %624, %625 : vector<8x128xf32>
    %627 = vector.broadcast %156 : f32 to vector<8x128xf32>
    %628 = vector.broadcast %112 : f32 to vector<8x128xf32>
    %629 = arith.mulf %628, %197 : vector<8x128xf32>
    %630 = arith.addf %627, %629 : vector<8x128xf32>
    %631 = vector.broadcast %113 : f32 to vector<8x128xf32>
    %632 = arith.mulf %631, %200 : vector<8x128xf32>
    %633 = arith.addf %630, %632 : vector<8x128xf32>
    %634 = vector.broadcast %114 : f32 to vector<8x128xf32>
    %635 = arith.mulf %634, %203 : vector<8x128xf32>
    %636 = arith.addf %633, %635 : vector<8x128xf32>
    %637 = vector.broadcast %115 : f32 to vector<8x128xf32>
    %638 = arith.mulf %637, %206 : vector<8x128xf32>
    %639 = arith.addf %636, %638 : vector<8x128xf32>
    %cst_72 = arith.constant 0.000000e+00 : f32
    %640 = vector.broadcast %cst_72 : f32 to vector<8x128xf32>
    %641 = arith.maximumf %639, %640 : vector<8x128xf32>
    %642 = vector.broadcast %157 : f32 to vector<8x128xf32>
    %643 = vector.broadcast %116 : f32 to vector<8x128xf32>
    %644 = arith.mulf %643, %197 : vector<8x128xf32>
    %645 = arith.addf %642, %644 : vector<8x128xf32>
    %646 = vector.broadcast %117 : f32 to vector<8x128xf32>
    %647 = arith.mulf %646, %200 : vector<8x128xf32>
    %648 = arith.addf %645, %647 : vector<8x128xf32>
    %649 = vector.broadcast %118 : f32 to vector<8x128xf32>
    %650 = arith.mulf %649, %203 : vector<8x128xf32>
    %651 = arith.addf %648, %650 : vector<8x128xf32>
    %652 = vector.broadcast %119 : f32 to vector<8x128xf32>
    %653 = arith.mulf %652, %206 : vector<8x128xf32>
    %654 = arith.addf %651, %653 : vector<8x128xf32>
    %cst_73 = arith.constant 0.000000e+00 : f32
    %655 = vector.broadcast %cst_73 : f32 to vector<8x128xf32>
    %656 = arith.maximumf %654, %655 : vector<8x128xf32>
    %657 = vector.broadcast %158 : f32 to vector<8x128xf32>
    %658 = vector.broadcast %120 : f32 to vector<8x128xf32>
    %659 = arith.mulf %658, %197 : vector<8x128xf32>
    %660 = arith.addf %657, %659 : vector<8x128xf32>
    %661 = vector.broadcast %121 : f32 to vector<8x128xf32>
    %662 = arith.mulf %661, %200 : vector<8x128xf32>
    %663 = arith.addf %660, %662 : vector<8x128xf32>
    %664 = vector.broadcast %122 : f32 to vector<8x128xf32>
    %665 = arith.mulf %664, %203 : vector<8x128xf32>
    %666 = arith.addf %663, %665 : vector<8x128xf32>
    %667 = vector.broadcast %123 : f32 to vector<8x128xf32>
    %668 = arith.mulf %667, %206 : vector<8x128xf32>
    %669 = arith.addf %666, %668 : vector<8x128xf32>
    %cst_74 = arith.constant 0.000000e+00 : f32
    %670 = vector.broadcast %cst_74 : f32 to vector<8x128xf32>
    %671 = arith.maximumf %669, %670 : vector<8x128xf32>
    %672 = vector.broadcast %159 : f32 to vector<8x128xf32>
    %673 = vector.broadcast %124 : f32 to vector<8x128xf32>
    %674 = arith.mulf %673, %197 : vector<8x128xf32>
    %675 = arith.addf %672, %674 : vector<8x128xf32>
    %676 = vector.broadcast %125 : f32 to vector<8x128xf32>
    %677 = arith.mulf %676, %200 : vector<8x128xf32>
    %678 = arith.addf %675, %677 : vector<8x128xf32>
    %679 = vector.broadcast %126 : f32 to vector<8x128xf32>
    %680 = arith.mulf %679, %203 : vector<8x128xf32>
    %681 = arith.addf %678, %680 : vector<8x128xf32>
    %682 = vector.broadcast %127 : f32 to vector<8x128xf32>
    %683 = arith.mulf %682, %206 : vector<8x128xf32>
    %684 = arith.addf %681, %683 : vector<8x128xf32>
    %cst_75 = arith.constant 0.000000e+00 : f32
    %685 = vector.broadcast %cst_75 : f32 to vector<8x128xf32>
    %686 = arith.maximumf %684, %685 : vector<8x128xf32>
    %687 = vector.broadcast %192 : f32 to vector<8x128xf32>
    %688 = vector.broadcast %160 : f32 to vector<8x128xf32>
    %689 = arith.mulf %688, %221 : vector<8x128xf32>
    %690 = arith.addf %687, %689 : vector<8x128xf32>
    %691 = vector.broadcast %161 : f32 to vector<8x128xf32>
    %692 = arith.mulf %691, %236 : vector<8x128xf32>
    %693 = arith.addf %690, %692 : vector<8x128xf32>
    %694 = vector.broadcast %162 : f32 to vector<8x128xf32>
    %695 = arith.mulf %694, %251 : vector<8x128xf32>
    %696 = arith.addf %693, %695 : vector<8x128xf32>
    %697 = vector.broadcast %163 : f32 to vector<8x128xf32>
    %698 = arith.mulf %697, %266 : vector<8x128xf32>
    %699 = arith.addf %696, %698 : vector<8x128xf32>
    %700 = vector.broadcast %164 : f32 to vector<8x128xf32>
    %701 = arith.mulf %700, %281 : vector<8x128xf32>
    %702 = arith.addf %699, %701 : vector<8x128xf32>
    %703 = vector.broadcast %165 : f32 to vector<8x128xf32>
    %704 = arith.mulf %703, %296 : vector<8x128xf32>
    %705 = arith.addf %702, %704 : vector<8x128xf32>
    %706 = vector.broadcast %166 : f32 to vector<8x128xf32>
    %707 = arith.mulf %706, %311 : vector<8x128xf32>
    %708 = arith.addf %705, %707 : vector<8x128xf32>
    %709 = vector.broadcast %167 : f32 to vector<8x128xf32>
    %710 = arith.mulf %709, %326 : vector<8x128xf32>
    %711 = arith.addf %708, %710 : vector<8x128xf32>
    %712 = vector.broadcast %168 : f32 to vector<8x128xf32>
    %713 = arith.mulf %712, %341 : vector<8x128xf32>
    %714 = arith.addf %711, %713 : vector<8x128xf32>
    %715 = vector.broadcast %169 : f32 to vector<8x128xf32>
    %716 = arith.mulf %715, %356 : vector<8x128xf32>
    %717 = arith.addf %714, %716 : vector<8x128xf32>
    %718 = vector.broadcast %170 : f32 to vector<8x128xf32>
    %719 = arith.mulf %718, %371 : vector<8x128xf32>
    %720 = arith.addf %717, %719 : vector<8x128xf32>
    %721 = vector.broadcast %171 : f32 to vector<8x128xf32>
    %722 = arith.mulf %721, %386 : vector<8x128xf32>
    %723 = arith.addf %720, %722 : vector<8x128xf32>
    %724 = vector.broadcast %172 : f32 to vector<8x128xf32>
    %725 = arith.mulf %724, %401 : vector<8x128xf32>
    %726 = arith.addf %723, %725 : vector<8x128xf32>
    %727 = vector.broadcast %173 : f32 to vector<8x128xf32>
    %728 = arith.mulf %727, %416 : vector<8x128xf32>
    %729 = arith.addf %726, %728 : vector<8x128xf32>
    %730 = vector.broadcast %174 : f32 to vector<8x128xf32>
    %731 = arith.mulf %730, %431 : vector<8x128xf32>
    %732 = arith.addf %729, %731 : vector<8x128xf32>
    %733 = vector.broadcast %175 : f32 to vector<8x128xf32>
    %734 = arith.mulf %733, %446 : vector<8x128xf32>
    %735 = arith.addf %732, %734 : vector<8x128xf32>
    %736 = vector.broadcast %176 : f32 to vector<8x128xf32>
    %737 = arith.mulf %736, %461 : vector<8x128xf32>
    %738 = arith.addf %735, %737 : vector<8x128xf32>
    %739 = vector.broadcast %177 : f32 to vector<8x128xf32>
    %740 = arith.mulf %739, %476 : vector<8x128xf32>
    %741 = arith.addf %738, %740 : vector<8x128xf32>
    %742 = vector.broadcast %178 : f32 to vector<8x128xf32>
    %743 = arith.mulf %742, %491 : vector<8x128xf32>
    %744 = arith.addf %741, %743 : vector<8x128xf32>
    %745 = vector.broadcast %179 : f32 to vector<8x128xf32>
    %746 = arith.mulf %745, %506 : vector<8x128xf32>
    %747 = arith.addf %744, %746 : vector<8x128xf32>
    %748 = vector.broadcast %180 : f32 to vector<8x128xf32>
    %749 = arith.mulf %748, %521 : vector<8x128xf32>
    %750 = arith.addf %747, %749 : vector<8x128xf32>
    %751 = vector.broadcast %181 : f32 to vector<8x128xf32>
    %752 = arith.mulf %751, %536 : vector<8x128xf32>
    %753 = arith.addf %750, %752 : vector<8x128xf32>
    %754 = vector.broadcast %182 : f32 to vector<8x128xf32>
    %755 = arith.mulf %754, %551 : vector<8x128xf32>
    %756 = arith.addf %753, %755 : vector<8x128xf32>
    %757 = vector.broadcast %183 : f32 to vector<8x128xf32>
    %758 = arith.mulf %757, %566 : vector<8x128xf32>
    %759 = arith.addf %756, %758 : vector<8x128xf32>
    %760 = vector.broadcast %184 : f32 to vector<8x128xf32>
    %761 = arith.mulf %760, %581 : vector<8x128xf32>
    %762 = arith.addf %759, %761 : vector<8x128xf32>
    %763 = vector.broadcast %185 : f32 to vector<8x128xf32>
    %764 = arith.mulf %763, %596 : vector<8x128xf32>
    %765 = arith.addf %762, %764 : vector<8x128xf32>
    %766 = vector.broadcast %186 : f32 to vector<8x128xf32>
    %767 = arith.mulf %766, %611 : vector<8x128xf32>
    %768 = arith.addf %765, %767 : vector<8x128xf32>
    %769 = vector.broadcast %187 : f32 to vector<8x128xf32>
    %770 = arith.mulf %769, %626 : vector<8x128xf32>
    %771 = arith.addf %768, %770 : vector<8x128xf32>
    %772 = vector.broadcast %188 : f32 to vector<8x128xf32>
    %773 = arith.mulf %772, %641 : vector<8x128xf32>
    %774 = arith.addf %771, %773 : vector<8x128xf32>
    %775 = vector.broadcast %189 : f32 to vector<8x128xf32>
    %776 = arith.mulf %775, %656 : vector<8x128xf32>
    %777 = arith.addf %774, %776 : vector<8x128xf32>
    %778 = vector.broadcast %190 : f32 to vector<8x128xf32>
    %779 = arith.mulf %778, %671 : vector<8x128xf32>
    %780 = arith.addf %777, %779 : vector<8x128xf32>
    %781 = vector.broadcast %191 : f32 to vector<8x128xf32>
    %782 = arith.mulf %781, %686 : vector<8x128xf32>
    %783 = arith.addf %780, %782 : vector<8x128xf32>
    %c0_76 = arith.constant 0 : index
    %784 = arith.index_cast %194 : i32 to index
    %c0_77 = arith.constant 0 : index
    %785 = vector.load %arg5[%c0_76, %784, %c0_77] : memref<1x8x128xf32, #tpu.memory_space<vmem>>, vector<1x8x128xf32>
    %786 = vector.shape_cast %785 : vector<1x8x128xf32> to vector<8x128xf32>
    %787 = vector.shape_cast %783 : vector<8x128xf32> to vector<1x8x128xf32>
    tpu.vector_store %arg5[%c0_76, %784, %c0_77], %787 {strides = array<i32>} : memref<1x8x128xf32, #tpu.memory_space<vmem>>, vector<1x8x128xf32>,
    %c1_i32 = arith.constant 1 : i32
    return
  }
  func.func @transform_0(%arg0: i32, %arg1: i32) -> i32 {
    %c0_i32 = arith.constant 0 : i32
    %c0_i32_0 = arith.constant 0 : i32
    return %c0_i32 : i32
  }
  func.func @transform_1(%arg0: i32, %arg1: i32) -> i32 {
    %c0_i32 = arith.constant 0 : i32
    %c0_i32_0 = arith.constant 0 : i32
    return %c0_i32 : i32
  }
  func.func @transform_2(%arg0: i32, %arg1: i32) -> (i32, i32, i32, i32) {
    %c0_i32 = arith.constant 0 : i32
    %c0_i32_0 = arith.constant 0 : i32
    %c0_i32_1 = arith.constant 0 : i32
    return %arg0, %c0_i32, %arg1, %c0_i32_0 : i32, i32, i32, i32
  }
  func.func @transform_3(%arg0: i32, %arg1: i32) -> (i32, i32, i32) {
    %c0_i32 = arith.constant 0 : i32
    %c0_i32_0 = arith.constant 0 : i32
    return %arg0, %arg1, %c0_i32 : i32, i32, i32
  }
}

</mosaic_0001>

<llo_original>
// kernel: tpu_custom_call.1
$region0: #{tpu_custom_call.1}
  #allocation0 [shape = 'u32[]', space=smem, size = 0x4, offset = 0x4, fixed_abs, tag = 'smem constant byte address 0x4 - core index']
  #allocation1 [shape = 'u32[144,128]{1,0:T(1,128)}', space=vmem, size = 0x12000, scoped, tag = 'internal scratch']
  %s0 = inlined_call_operand.hbm [shape: f32[160], index: 0, kind: input, shape index: {}]
  %s1 = inlined_call_operand.vmem [shape: f32[33], index: 1, kind: input, shape index: {}]
  %s2 = inlined_call_operand.hbm [shape: f32[2,4,8,128], index: 2, kind: input, shape index: {}]
  %s3 = inlined_call_operand.hbm [shape: f32[2,8,128], index: 3, kind: output, shape index: {}]
  %s4 = sld [smem:[#allocation0]]
  $region57: #{tpu_custom_call.1} parent=0
    _
  %s6 = ssub.s32 1, %s4
  %s7 = scalar_select 0, %s6, %s4
  $region1: #{tpu_custom_call.1} parent=0
    #allocation2 [shape = 'u8[1024]{0}', space=smem, size = 0x400, scoped, tag = 'input window, operand 0, single buffered']
    #allocation3 [shape = 's32[2]{0}', space=sflag, size = 0x8, scoped, tag = 'scoped memory for tpu_custom_call.1']
    #allocation4 [shape = 's32[2]{0}', space=sflag, size = 0x8, scoped, tag = 'scoped memory for tpu_custom_call.1']
    #allocation5 [shape = 's32[2]{0}', space=sflag, size = 0x8, scoped, tag = 'scoped memory for tpu_custom_call.1']
    #allocation6 [shape = 's32[2]{0}', space=sflag, size = 0x8, scoped, tag = 'scoped memory for tpu_custom_call.1']
    #allocation7 [shape = 'u8[512]{0}', space=smem, size = 0x200, scoped, tag = 'input window, operand 1, single buffered']
    #allocation8 [shape = 'u8[32768]{0}', space=vmem, size = 0x8000, scoped, tag = 'input window, operand 2']
    #allocation9 [shape = 'u8[8192]{0}', space=vmem, size = 0x2000, scoped, tag = 'output window, operand 0']
    %8 = vsyncpa [#allocation5], 0
    %9 = vsyncpa [#allocation6], 0
    %10 = vsyncpa [#allocation3], 0
    %s11 = scalar_lea.sflag [#allocation3], 1
    %12 = vsyncpa %s11, 0
    %13 = vsyncpa [#allocation4], 0
    %s14 = scalar_lea.sflag [#allocation4], 1
    %15 = vsyncpa %s14, 0
    loop: start=0, step=1, limit=4
    $region2: #{tpu_custom_call.1} parent=1 // loop_pre_header
      _
    $region3: #{tpu_custom_call.1} parent=1 // loop_header
      %s17 = sphi 0, %s21
      %p18 = scmp.ge.s32.totalorder %s17, 4
      %s24 = sphi 0, %s36
      %s25 = sphi 0, %s32
      %s26 = sphi 0, %s24
      %s27 = sphi 0, %s25
      %s28 = sphi 0, %s26
      %s29 = sphi 0, %s27
      %s37 = sphi 0, %s37
      %s39 = sphi 0, %s37
      %s40 = sphi 0, %s39
      %s54 = sphi 0, %s40
      %s58 = sphi 0, %s58
      %s60 = sphi 0, %s58
      %s61 = sphi 0, %s60
      %s75 = sphi 0, %s61
      %s83 = sphi 0, %s85
      %s86 = sphi 0, %s83
      %s87 = sphi 0, %s86
      %s103 = sphi 0, %s87
      %s111 = sphi 0, %s113
      %s114 = sphi 0, %s111
      %s115 = sphi 0, %s114
      %s131 = sphi 0, %s115
    $region4: #{tpu_custom_call.1} parent=1 // loop_header_branch
      %20 = sbr.rel (%p18) target = $region8
    $region5: #{tpu_custom_call.1} parent=1 // loop_body
      %s22 = ssub.s32 %s17, 1
      %s23 = ssub.s32 %s17, 2
      %s30 = sadd.s32 1, %s25
      %p31 = scmp.ge.s32.totalorder %s30, 1
      %s32 = scalar_select %p31, 0, %s30
      %s33 = sadd.s32 1, %s24
      %s34 = scalar_select %p31, %s33, %s24
      %p35 = scmp.ge.s32.totalorder %s34, 2
      %s36 = scalar_select %p35, 0, %s34
      %s38 = sadd.s32 %s37, 1
      %p41 = scmp.eq.s32.totalorder %s17, 1
      %p42 = scmp.ne.s32.totalorder %s37, %s39
      %p43 = scmp.eq.s32.totalorder %s17, 0
      %p44 = por %p42, %p43
      %p45 = scmp.ne.s32.totalorder %s37, %s39
      %p46 = scmp.eq.s32.totalorder %s22, 1
      %p47 = por %p45, %p46
      %p48 = scmp.ne.s32.totalorder %s39, %s40
      %p49 = scmp.eq.s32.totalorder %s22, 0
      %p50 = por %p48, %p49
      %p51 = scmp.ne.s32.totalorder %s39, %s40
      %p52 = scmp.eq.s32.totalorder %s23, 1
      %p53 = por %p51, %p52
      %p55 = scmp.ne.s32.totalorder %s40, %s54
      %p56 = scmp.eq.s32.totalorder %s23, 0
      %p57 = por %p55, %p56
      %s59 = sadd.s32 %s58, 1
      %p62 = scmp.eq.s32.totalorder %s17, 1
      %p63 = scmp.ne.s32.totalorder %s58, %s60
      %p64 = scmp.eq.s32.totalorder %s17, 0
      %p65 = por %p63, %p64
      %p66 = scmp.ne.s32.totalorder %s58, %s60
      %p67 = scmp.eq.s32.totalorder %s22, 1
      %p68 = por %p66, %p67
      %p69 = scmp.ne.s32.totalorder %s60, %s61
      %p70 = scmp.eq.s32.totalorder %s22, 0
      %p71 = por %p69, %p70
      %p72 = scmp.ne.s32.totalorder %s60, %s61
      %p73 = scmp.eq.s32.totalorder %s23, 1
      %p74 = por %p72, %p73
      %p76 = scmp.ne.s32.totalorder %s61, %s75
      %p77 = scmp.eq.s32.totalorder %s23, 0
      %p78 = por %p76, %p77
      %s79 = ssub.s32 %s24, %s36
      %s80 = ssub.s32 %s25, %s32
      %s81 = sor.u32 %s79, %s80
      %p82 = scmp.eq.s32.totalorder %s81, 0
      %s84 = sadd.s32 %s83, 1
      %s85 = scalar_select %p82, %s83, %s84
      %p88 = pneg %p82
      %p89 = scmp.eq.s32.totalorder %s17, 1
      %p90 = por %p88, %p89
      %p91 = scmp.ne.s32.totalorder %s83, %s86
      %p92 = scmp.eq.s32.totalorder %s17, 0
      %p93 = por %p91, %p92
      %p94 = scmp.ne.s32.totalorder %s83, %s86
      %p95 = scmp.eq.s32.totalorder %s22, 1
      %p96 = por %p94, %p95
      %p97 = scmp.ne.s32.totalorder %s86, %s87
      %p98 = scmp.eq.s32.totalorder %s22, 0
      %p99 = por %p97, %p98
      %p100 = scmp.ne.s32.totalorder %s86, %s87
      %p101 = scmp.eq.s32.totalorder %s23, 1
      %p102 = por %p100, %p101
      %p104 = scmp.ne.s32.totalorder %s87, %s103
      %p105 = scmp.eq.s32.totalorder %s23, 0
      %p106 = por %p104, %p105
      %s107 = ssub.s32 %s24, %s36
      %s108 = ssub.s32 %s25, %s32
      %s109 = sor.u32 %s107, %s108
      %p110 = scmp.eq.s32.totalorder %s109, 0
      %s112 = sadd.s32 %s111, 1
      %s113 = scalar_select %p110, %s111, %s112
      %p116 = pneg %p110
      %p117 = scmp.eq.s32.totalorder %s17, 1
      %p118 = por %p116, %p117
      %p119 = scmp.ne.s32.totalorder %s111, %s114
      %p120 = scmp.eq.s32.totalorder %s17, 0
      %p121 = por %p119, %p120
      %p122 = scmp.ne.s32.totalorder %s111, %s114
      %p123 = scmp.eq.s32.totalorder %s22, 1
      %p124 = por %p122, %p123
      %p125 = scmp.ne.s32.totalorder %s114, %s115
      %p126 = scmp.eq.s32.totalorder %s22, 0
      %p127 = por %p125, %p126
      %p128 = scmp.ne.s32.totalorder %s114, %s115
      %p129 = scmp.eq.s32.totalorder %s23, 1
      %p130 = por %p128, %p129
      %p132 = scmp.ne.s32.totalorder %s115, %s131
      %p133 = scmp.eq.s32.totalorder %s23, 0
      %p134 = por %p132, %p133
      %p135 = scmp.le.s32.totalorder 1, %s17
      %p136 = scmp.lt.s32.totalorder %s17, 3
      %p137 = pnand %p135, %p136
      %p138 = pneg %p137
      // Predicated region
      $region9: #{tpu_custom_call.1} parent=5 // pred_check
        _
      $region10: #{tpu_custom_call.1} parent=5 // pred_check_branch
        %140 = sbr.rel (%p137) target = $region12
      $region11: #{tpu_custom_call.1} parent=5 // pred_region
        %s141 = ssub.s32 %s17, 1
        // Predicated region
        $region13: #{tpu_custom_call.1} parent=11 // pred_check
          %p142 = pneg %p50
        $region14: #{tpu_custom_call.1} parent=11 // pred_check_branch
          %144 = sbr.rel (%p142) target = $region16
        $region15: #{tpu_custom_call.1} parent=11 // pred_region
          %s146 = ssub.s32 32, 32
          %147 = vsyncadd [#allocation5], %s146
          %150 = dma.hbm_to_smem %s0, 32, [#allocation2], [#allocation5]
        $region16: #{tpu_custom_call.1} parent=11 // pred_fallthru
          _
        // Predicated region
        $region17: #{tpu_custom_call.1} parent=11 // pred_check
          %p151 = pneg %p71
        $region18: #{tpu_custom_call.1} parent=11 // pred_check_branch
          %153 = sbr.rel (%p151) target = $region20
        $region19: #{tpu_custom_call.1} parent=11 // pred_region
          %s155 = ssub.s32 16, 16
          %156 = vsyncadd [#allocation6], %s155
          %s158 = sshll.u32 %s1, 4
          %s159 = int_to_ptr.vmem [resolvable:$true] %s158
          %161 = dma.vmem_to_smem %s159, 16, [#allocation7], [#allocation6]
        $region20: #{tpu_custom_call.1} parent=11 // pred_fallthru
          _
      $region12: #{tpu_custom_call.1} parent=5 // pred_fallthru
        _
      %p162 = scmp.lt.s32.totalorder %s17, 2
      // Predicated region
      $region21: #{tpu_custom_call.1} parent=5 // pred_check
        %p163 = pneg %p162
      $region22: #{tpu_custom_call.1} parent=5 // pred_check_branch
        %165 = sbr.rel (%p163) target = $region24
      $region23: #{tpu_custom_call.1} parent=5 // pred_region
        // Predicated region
        $region25: #{tpu_custom_call.1} parent=23 // pred_check
          %p166 = pneg %p93
        $region26: #{tpu_custom_call.1} parent=23 // pred_check_branch
          %168 = sbr.rel (%p166) target = $region28
        $region27: #{tpu_custom_call.1} parent=23 // pred_region
          %s169 = sand.u32 %s83, 1
          %s170 = scalar_lea.sflag [#allocation3], %s169
          %s171 = sand.u32 %s83, 1
          %s172 = smul.addr %s171, 32
          %s173 = scalar_lea.vmem [#allocation8], %s172
          %s175 = ssub.s32 512, 512
          %176 = vsyncadd %s170, %s175
          %s177 = smul.addr %s24, 4
          %s178 = sadd.s32 %s25, %s177
          %s179 = smul.addr %s178, 128
          %s180 = scalar_lea.hbm %s2, %s179
          %s181 = sshll.u32 %s173, 4
          %s182 = int_to_ptr.vmem [resolvable:$true] %s181
          %187 = dma.hbm_to_vmem [thread:$0]  %s180, 512, %s182, %s170, 128, 128, 8
        $region28: #{tpu_custom_call.1} parent=23 // pred_fallthru
          _
      $region24: #{tpu_custom_call.1} parent=5 // pred_fallthru
        _
      %p188 = scmp.le.s32.totalorder 1, %s17
      %p189 = scmp.lt.s32.totalorder %s17, 3
      %p190 = pnand %p188, %p189
      %p191 = pneg %p190
      // Predicated region
      $region29: #{tpu_custom_call.1} parent=5 // pred_check
        _
      $region30: #{tpu_custom_call.1} parent=5 // pred_check_branch
        %193 = sbr.rel (%p190) target = $region32
      $region31: #{tpu_custom_call.1} parent=5 // pred_region
        %s194 = ssub.s32 %s17, 1
        // Predicated region
        $region33: #{tpu_custom_call.1} parent=31 // pred_check
          %p195 = pneg %p50
        $region34: #{tpu_custom_call.1} parent=31 // pred_check_branch
          %197 = sbr.rel (%p195) target = $region36
        $region35: #{tpu_custom_call.1} parent=31 // pred_region
          %198 = dma.done [#allocation5], 32
        $region36: #{tpu_custom_call.1} parent=31 // pred_fallthru
          _
        // Predicated region
        $region37: #{tpu_custom_call.1} parent=31 // pred_check
          %p199 = pneg %p71
        $region38: #{tpu_custom_call.1} parent=31 // pred_check_branch
          %201 = sbr.rel (%p199) target = $region40
        $region39: #{tpu_custom_call.1} parent=31 // pred_region
          %202 = dma.done [#allocation6], 16
        $region40: #{tpu_custom_call.1} parent=31 // pred_fallthru
          _
        %s203 = sand.u32 %s86, 1
        %s204 = scalar_lea.sflag [#allocation3], %s203
        %s205 = sand.u32 %s86, 1
        %s206 = smul.addr %s205, 32
        %s207 = scalar_lea.vmem [#allocation8], %s206
        // Predicated region
        $region41: #{tpu_custom_call.1} parent=31 // pred_check
          %p208 = pneg %p99
        $region42: #{tpu_custom_call.1} parent=31 // pred_check_branch
          %210 = sbr.rel (%p208) target = $region44
        $region43: #{tpu_custom_call.1} parent=31 // pred_region
          %211 = dma.done %s204, 512
        $region44: #{tpu_custom_call.1} parent=31 // pred_fallthru
          _
        %212 = sfence
        %p213 = pneg %p50
        %p214 = pneg %p47
        %p215 = pneg %p71
        %p216 = pneg %p68
        %s217 = sand.u32 %s86, 1
        %s218 = scalar_lea.sflag [#allocation3], %s217
        %s219 = sand.u32 %s86, 1
        %s220 = smul.addr %s219, 32
        %s221 = scalar_lea.vmem [#allocation8], %s220
        %p222 = pneg %p99
        %p223 = pneg %p96
        %p224 = pneg %p127
        %p225 = pneg %p124
        %s226 = sand.u32 %s114, 1
        %s227 = scalar_lea.sflag [#allocation4], %s226
        %s228 = sand.u32 %s114, 1
        %s229 = smul.addr %s228, 8
        %s230 = scalar_lea.vmem [#allocation9], %s229
        %s231 = sld [smem:[#allocation2]]
        %s232 = sld [smem:[#allocation2 + $0x1]]
        %s233 = sld [smem:[#allocation2 + $0x2]]
        %s234 = sld [smem:[#allocation2 + $0x3]]
        %s235 = sld [smem:[#allocation2 + $0x4]]
        %s236 = sld [smem:[#allocation2 + $0x5]]
        %s237 = sld [smem:[#allocation2 + $0x6]]
        %s238 = sld [smem:[#allocation2 + $0x7]]
        %s239 = sld [smem:[#allocation2 + $0x8]]
        %s240 = sld [smem:[#allocation2 + $0x9]]
        %s241 = sld [smem:[#allocation2 + $0xa]]
        %s242 = sld [smem:[#allocation2 + $0xb]]
        %s243 = sld [smem:[#allocation2 + $0xc]]
        %s244 = sld [smem:[#allocation2 + $0xd]]
        %s245 = sld [smem:[#allocation2 + $0xe]]
        %s246 = sld [smem:[#allocation2 + $0xf]]
        %s247 = sld [smem:[#allocation2 + $0x10]]
        %s248 = sld [smem:[#allocation2 + $0x11]]
        %s249 = sld [smem:[#allocation2 + $0x12]]
        %s250 = sld [smem:[#allocation2 + $0x13]]
        %s251 = sld [smem:[#allocation2 + $0x14]]
        %s252 = sld [smem:[#allocation2 + $0x15]]
        %s253 = sld [smem:[#allocation2 + $0x16]]
        %s254 = sld [smem:[#allocation2 + $0x17]]
        %s255 = sld [smem:[#allocation2 + $0x18]]
        %s256 = sld [smem:[#allocation2 + $0x19]]
        %s257 = sld [smem:[#allocation2 + $0x1a]]
        %s258 = sld [smem:[#allocation2 + $0x1b]]
        %s259 = sld [smem:[#allocation2 + $0x1c]]
        %s260 = sld [smem:[#allocation2 + $0x1d]]
        %s261 = sld [smem:[#allocation2 + $0x1e]]
        %s262 = sld [smem:[#allocation2 + $0x1f]]
        %s263 = sld [smem:[#allocation2 + $0x20]]
        %s264 = sld [smem:[#allocation2 + $0x21]]
        %s265 = sld [smem:[#allocation2 + $0x22]]
        %s266 = sld [smem:[#allocation2 + $0x23]]
        %s267 = sld [smem:[#allocation2 + $0x24]]
        %s268 = sld [smem:[#allocation2 + $0x25]]
        %s269 = sld [smem:[#allocation2 + $0x26]]
        %s270 = sld [smem:[#allocation2 + $0x27]]
        %s271 = sld [smem:[#allocation2 + $0x28]]
        %s272 = sld [smem:[#allocation2 + $0x29]]
        %s273 = sld [smem:[#allocation2 + $0x2a]]
        %s274 = sld [smem:[#allocation2 + $0x2b]]
        %s275 = sld [smem:[#allocation2 + $0x2c]]
        %s276 = sld [smem:[#allocation2 + $0x2d]]
        %s277 = sld [smem:[#allocation2 + $0x2e]]
        %s278 = sld [smem:[#allocation2 + $0x2f]]
        %s279 = sld [smem:[#allocation2 + $0x30]]
        %s280 = sld [smem:[#allocation2 + $0x31]]
        %s281 = sld [smem:[#allocation2 + $0x32]]
        %s282 = sld [smem:[#allocation2 + $0x33]]
        %s283 = sld [smem:[#allocation2 + $0x34]]
        %s284 = sld [smem:[#allocation2 + $0x35]]
        %s285 = sld [smem:[#allocation2 + $0x36]]
        %s286 = sld [smem:[#allocation2 + $0x37]]
        %s287 = sld [smem:[#allocation2 + $0x38]]
        %s288 = sld [smem:[#allocation2 + $0x39]]
        %s289 = sld [smem:[#allocation2 + $0x3a]]
        %s290 = sld [smem:[#allocation2 + $0x3b]]
        %s291 = sld [smem:[#allocation2 + $0x3c]]
        %s292 = sld [smem:[#allocation2 + $0x3d]]
        %s293 = sld [smem:[#allocation2 + $0x3e]]
        %s294 = sld [smem:[#allocation2 + $0x3f]]
        %s295 = sld [smem:[#allocation2 + $0x40]]
        %s296 = sld [smem:[#allocation2 + $0x41]]
        %s297 = sld [smem:[#allocation2 + $0x42]]
        %s298 = sld [smem:[#allocation2 + $0x43]]
        %s299 = sld [smem:[#allocation2 + $0x44]]
        %s300 = sld [smem:[#allocation2 + $0x45]]
        %s301 = sld [smem:[#allocation2 + $0x46]]
        %s302 = sld [smem:[#allocation2 + $0x47]]
        %s303 = sld [smem:[#allocation2 + $0x48]]
        %s304 = sld [smem:[#allocation2 + $0x49]]
        %s305 = sld [smem:[#allocation2 + $0x4a]]
        %s306 = sld [smem:[#allocation2 + $0x4b]]
        %s307 = sld [smem:[#allocation2 + $0x4c]]
        %s308 = sld [smem:[#allocation2 + $0x4d]]
        %s309 = sld [smem:[#allocation2 + $0x4e]]
        %s310 = sld [smem:[#allocation2 + $0x4f]]
        %s311 = sld [smem:[#allocation2 + $0x50]]
        %s312 = sld [smem:[#allocation2 + $0x51]]
        %s313 = sld [smem:[#allocation2 + $0x52]]
        %s314 = sld [smem:[#allocation2 + $0x53]]
        %s315 = sld [smem:[#allocation2 + $0x54]]
        %s316 = sld [smem:[#allocation2 + $0x55]]
        %s317 = sld [smem:[#allocation2 + $0x56]]
        %s318 = sld [smem:[#allocation2 + $0x57]]
        %s319 = sld [smem:[#allocation2 + $0x58]]
        %s320 = sld [smem:[#allocation2 + $0x59]]
        %s321 = sld [smem:[#allocation2 + $0x5a]]
        %s322 = sld [smem:[#allocation2 + $0x5b]]
        %s323 = sld [smem:[#allocation2 + $0x5c]]
        %s324 = sld [smem:[#allocation2 + $0x5d]]
        %s325 = sld [smem:[#allocation2 + $0x5e]]
        %s326 = sld [smem:[#allocation2 + $0x5f]]
        %s327 = sld [smem:[#allocation2 + $0x60]]
        %s328 = sld [smem:[#allocation2 + $0x61]]
        %s329 = sld [smem:[#allocation2 + $0x62]]
        %s330 = sld [smem:[#allocation2 + $0x63]]
        %s331 = sld [smem:[#allocation2 + $0x64]]
        %s332 = sld [smem:[#allocation2 + $0x65]]
        %s333 = sld [smem:[#allocation2 + $0x66]]
        %s334 = sld [smem:[#allocation2 + $0x67]]
        %s335 = sld [smem:[#allocation2 + $0x68]]
        %s336 = sld [smem:[#allocation2 + $0x69]]
        %s337 = sld [smem:[#allocation2 + $0x6a]]
        %s338 = sld [smem:[#allocation2 + $0x6b]]
        %s339 = sld [smem:[#allocation2 + $0x6c]]
        %s340 = sld [smem:[#allocation2 + $0x6d]]
        %s341 = sld [smem:[#allocation2 + $0x6e]]
        %s342 = sld [smem:[#allocation2 + $0x6f]]
        %s343 = sld [smem:[#allocation2 + $0x70]]
        %s344 = sld [smem:[#allocation2 + $0x71]]
        %s345 = sld [smem:[#allocation2 + $0x72]]
        %s346 = sld [smem:[#allocation2 + $0x73]]
        %s347 = sld [smem:[#allocation2 + $0x74]]
        %s348 = sld [smem:[#allocation2 + $0x75]]
        %s349 = sld [smem:[#allocation2 + $0x76]]
        %s350 = sld [smem:[#allocation2 + $0x77]]
        %s351 = sld [smem:[#allocation2 + $0x78]]
        %s352 = sld [smem:[#allocation2 + $0x79]]
        %s353 = sld [smem:[#allocation2 + $0x7a]]
        %s354 = sld [smem:[#allocation2 + $0x7b]]
        %s355 = sld [smem:[#allocation2 + $0x7c]]
        %s356 = sld [smem:[#allocation2 + $0x7d]]
        %s357 = sld [smem:[#allocation2 + $0x7e]]
        %s358 = sld [smem:[#allocation2 + $0x7f]]
        %s359 = sld [smem:[#allocation7]]
        %s360 = sld [smem:[#allocation7 + $0x1]]
        %s361 = sld [smem:[#allocation7 + $0x2]]
        %s362 = sld [smem:[#allocation7 + $0x3]]
        %s363 = sld [smem:[#allocation7 + $0x4]]
        %s364 = sld [smem:[#allocation7 + $0x5]]
        %s365 = sld [smem:[#allocation7 + $0x6]]
        %s366 = sld [smem:[#allocation7 + $0x7]]
        %s367 = sld [smem:[#allocation7 + $0x8]]
        %s368 = sld [smem:[#allocation7 + $0x9]]
        %s369 = sld [smem:[#allocation7 + $0xa]]
        %s370 = sld [smem:[#allocation7 + $0xb]]
        %s371 = sld [smem:[#allocation7 + $0xc]]
        %s372 = sld [smem:[#allocation7 + $0xd]]
        %s373 = sld [smem:[#allocation7 + $0xe]]
        %s374 = sld [smem:[#allocation7 + $0xf]]
        %s375 = sld [smem:[#allocation7 + $0x10]]
        %s376 = sld [smem:[#allocation7 + $0x11]]
        %s377 = sld [smem:[#allocation7 + $0x12]]
        %s378 = sld [smem:[#allocation7 + $0x13]]
        %s379 = sld [smem:[#allocation7 + $0x14]]
        %s380 = sld [smem:[#allocation7 + $0x15]]
        %s381 = sld [smem:[#allocation7 + $0x16]]
        %s382 = sld [smem:[#allocation7 + $0x17]]
        %s383 = sld [smem:[#allocation7 + $0x18]]
        %s384 = sld [smem:[#allocation7 + $0x19]]
        %s385 = sld [smem:[#allocation7 + $0x1a]]
        %s386 = sld [smem:[#allocation7 + $0x1b]]
        %s387 = sld [smem:[#allocation7 + $0x1c]]
        %s388 = sld [smem:[#allocation7 + $0x1d]]
        %s389 = sld [smem:[#allocation7 + $0x1e]]
        %s390 = sld [smem:[#allocation7 + $0x1f]]
        %s391 = sld [smem:[#allocation2 + $0x80]]
        %s392 = sld [smem:[#allocation2 + $0x81]]
        %s393 = sld [smem:[#allocation2 + $0x82]]
        %s394 = sld [smem:[#allocation2 + $0x83]]
        %s395 = sld [smem:[#allocation2 + $0x84]]
        %s396 = sld [smem:[#allocation2 + $0x85]]
        %s397 = sld [smem:[#allocation2 + $0x86]]
        %s398 = sld [smem:[#allocation2 + $0x87]]
        %s399 = sld [smem:[#allocation2 + $0x88]]
        %s400 = sld [smem:[#allocation2 + $0x89]]
        %s401 = sld [smem:[#allocation2 + $0x8a]]
        %s402 = sld [smem:[#allocation2 + $0x8b]]
        %s403 = sld [smem:[#allocation2 + $0x8c]]
        %s404 = sld [smem:[#allocation2 + $0x8d]]
        %s405 = sld [smem:[#allocation2 + $0x8e]]
        %s406 = sld [smem:[#allocation2 + $0x8f]]
        %s407 = sld [smem:[#allocation2 + $0x90]]
        %s408 = sld [smem:[#allocation2 + $0x91]]
        %s409 = sld [smem:[#allocation2 + $0x92]]
        %s410 = sld [smem:[#allocation2 + $0x93]]
        %s411 = sld [smem:[#allocation2 + $0x94]]
        %s412 = sld [smem:[#allocation2 + $0x95]]
        %s413 = sld [smem:[#allocation2 + $0x96]]
        %s414 = sld [smem:[#allocation2 + $0x97]]
        %s415 = sld [smem:[#allocation2 + $0x98]]
        %s416 = sld [smem:[#allocation2 + $0x99]]
        %s417 = sld [smem:[#allocation2 + $0x9a]]
        %s418 = sld [smem:[#allocation2 + $0x9b]]
        %s419 = sld [smem:[#allocation2 + $0x9c]]
        %s420 = sld [smem:[#allocation2 + $0x9d]]
        %s421 = sld [smem:[#allocation2 + $0x9e]]
        %s422 = sld [smem:[#allocation2 + $0x9f]]
        %s423 = sld [smem:[#allocation7 + $0x20]]
        %v424 = vld [vmem:[%s207] sm:$0xff]
        %s425 = sadd.s32 0, 8
        %s426 = scalar_lea.vmem %s207, %s425 [#allocation8]
        %v427 = vld [vmem:[%s426] sm:$0xff]
        %s428 = sadd.s32 0, 16
        %s429 = scalar_lea.vmem %s207, %s428 [#allocation8]
        %v430 = vld [vmem:[%s429] sm:$0xff]
        %s431 = sadd.s32 0, 24
        %s432 = scalar_lea.vmem %s207, %s431 [#allocation8]
        %v433 = vld [vmem:[%s432] sm:$0xff]
        %v434 = vstv %s359
        %v435 = vstv %s231
        %v436 = vmul.f32 %v435, %v424
        %v437 = vadd.f32 %v434, %v436
        %v438 = vstv %s232
        %v439 = vmul.f32 %v438, %v427
        %v440 = vadd.f32 %v437, %v439
        %v441 = vstv %s233
        %v442 = vmul.f32 %v441, %v430
        %v443 = vadd.f32 %v440, %v442
        %v444 = vstv %s234
        %v445 = vmul.f32 %v444, %v433
        %v446 = vadd.f32 %v443, %v445
        %v447 = vmax.f32 %v446, 0.0
        %v448 = vstv %s360
        %v449 = vstv %s235
        %v450 = vmul.f32 %v449, %v424
        %v451 = vadd.f32 %v448, %v450
        %v452 = vstv %s236
        %v453 = vmul.f32 %v452, %v427
        %v454 = vadd.f32 %v451, %v453
        %v455 = vstv %s237
        %v456 = vmul.f32 %v455, %v430
        %v457 = vadd.f32 %v454, %v456
        %v458 = vstv %s238
        %v459 = vmul.f32 %v458, %v433
        %v460 = vadd.f32 %v457, %v459
        %v461 = vmax.f32 %v460, 0.0
        %v462 = vstv %s361
        %v463 = vstv %s239
        %v464 = vmul.f32 %v463, %v424
        %v465 = vadd.f32 %v462, %v464
        %v466 = vstv %s240
        %v467 = vmul.f32 %v466, %v427
        %v468 = vadd.f32 %v465, %v467
        %v469 = vstv %s241
        %v470 = vmul.f32 %v469, %v430
        %v471 = vadd.f32 %v468, %v470
        %v472 = vstv %s242
        %v473 = vmul.f32 %v472, %v433
        %v474 = vadd.f32 %v471, %v473
        %v475 = vmax.f32 %v474, 0.0
        %v476 = vstv %s362
        %v477 = vstv %s243
        %v478 = vmul.f32 %v477, %v424
        %v479 = vadd.f32 %v476, %v478
        %v480 = vstv %s244
        %v481 = vmul.f32 %v480, %v427
        %v482 = vadd.f32 %v479, %v481
        %v483 = vstv %s245
        %v484 = vmul.f32 %v483, %v430
        %v485 = vadd.f32 %v482, %v484
        %v486 = vstv %s246
        %v487 = vmul.f32 %v486, %v433
        %v488 = vadd.f32 %v485, %v487
        %v489 = vmax.f32 %v488, 0.0
        %v490 = vstv %s363
        %v491 = vstv %s247
        %v492 = vmul.f32 %v491, %v424
        %v493 = vadd.f32 %v490, %v492
        %v494 = vstv %s248
        %v495 = vmul.f32 %v494, %v427
        %v496 = vadd.f32 %v493, %v495
        %v497 = vstv %s249
        %v498 = vmul.f32 %v497, %v430
        %v499 = vadd.f32 %v496, %v498
        %v500 = vstv %s250
        %v501 = vmul.f32 %v500, %v433
        %v502 = vadd.f32 %v499, %v501
        %v503 = vmax.f32 %v502, 0.0
        %v504 = vstv %s364
        %v505 = vstv %s251
        %v506 = vmul.f32 %v505, %v424
        %v507 = vadd.f32 %v504, %v506
        %v508 = vstv %s252
        %v509 = vmul.f32 %v508, %v427
        %v510 = vadd.f32 %v507, %v509
        %v511 = vstv %s253
        %v512 = vmul.f32 %v511, %v430
        %v513 = vadd.f32 %v510, %v512
        %v514 = vstv %s254
        %v515 = vmul.f32 %v514, %v433
        %v516 = vadd.f32 %v513, %v515
        %v517 = vmax.f32 %v516, 0.0
        %v518 = vstv %s365
        %v519 = vstv %s255
        %v520 = vmul.f32 %v519, %v424
        %v521 = vadd.f32 %v518, %v520
        %v522 = vstv %s256
        %v523 = vmul.f32 %v522, %v427
        %v524 = vadd.f32 %v521, %v523
        %v525 = vstv %s257
        %v526 = vmul.f32 %v525, %v430
        %v527 = vadd.f32 %v524, %v526
        %v528 = vstv %s258
        %v529 = vmul.f32 %v528, %v433
        %v530 = vadd.f32 %v527, %v529
        %v531 = vmax.f32 %v530, 0.0
        %v532 = vstv %s366
        %v533 = vstv %s259
        %v534 = vmul.f32 %v533, %v424
        %v535 = vadd.f32 %v532, %v534
        %v536 = vstv %s260
        %v537 = vmul.f32 %v536, %v427
        %v538 = vadd.f32 %v535, %v537
        %v539 = vstv %s261
        %v540 = vmul.f32 %v539, %v430
        %v541 = vadd.f32 %v538, %v540
        %v542 = vstv %s262
        %v543 = vmul.f32 %v542, %v433
        %v544 = vadd.f32 %v541, %v543
        %v545 = vmax.f32 %v544, 0.0
        %v546 = vstv %s367
        %v547 = vstv %s263
        %v548 = vmul.f32 %v547, %v424
        %v549 = vadd.f32 %v546, %v548
        %v550 = vstv %s264
        %v551 = vmul.f32 %v550, %v427
        %v552 = vadd.f32 %v549, %v551
        %v553 = vstv %s265
        %v554 = vmul.f32 %v553, %v430
        %v555 = vadd.f32 %v552, %v554
        %v556 = vstv %s266
        %v557 = vmul.f32 %v556, %v433
        %v558 = vadd.f32 %v555, %v557
        %v559 = vmax.f32 %v558, 0.0
        %v560 = vstv %s368
        %v561 = vstv %s267
        %v562 = vmul.f32 %v561, %v424
        %v563 = vadd.f32 %v560, %v562
        %v564 = vstv %s268
        %v565 = vmul.f32 %v564, %v427
        %v566 = vadd.f32 %v563, %v565
        %v567 = vstv %s269
        %v568 = vmul.f32 %v567, %v430
        %v569 = vadd.f32 %v566, %v568
        %v570 = vstv %s270
        %v571 = vmul.f32 %v570, %v433
        %v572 = vadd.f32 %v569, %v571
        %v573 = vmax.f32 %v572, 0.0
        %v574 = vstv %s369
        %v575 = vstv %s271
        %v576 = vmul.f32 %v575, %v424
        %v577 = vadd.f32 %v574, %v576
        %v578 = vstv %s272
        %v579 = vmul.f32 %v578, %v427
        %v580 = vadd.f32 %v577, %v579
        %v581 = vstv %s273
        %v582 = vmul.f32 %v581, %v430
        %v583 = vadd.f32 %v580, %v582
        %v584 = vstv %s274
        %v585 = vmul.f32 %v584, %v433
        %v586 = vadd.f32 %v583, %v585
        %v587 = vmax.f32 %v586, 0.0
        %v588 = vstv %s370
        %v589 = vstv %s275
        %v590 = vmul.f32 %v589, %v424
        %v591 = vadd.f32 %v588, %v590
        %v592 = vstv %s276
        %v593 = vmul.f32 %v592, %v427
        %v594 = vadd.f32 %v591, %v593
        %v595 = vstv %s277
        %v596 = vmul.f32 %v595, %v430
        %v597 = vadd.f32 %v594, %v596
        %v598 = vstv %s278
        %v599 = vmul.f32 %v598, %v433
        %v600 = vadd.f32 %v597, %v599
        %v601 = vmax.f32 %v600, 0.0
        %v602 = vstv %s371
        %v603 = vstv %s279
        %v604 = vmul.f32 %v603, %v424
        %v605 = vadd.f32 %v602, %v604
        %v606 = vstv %s280
        %v607 = vmul.f32 %v606, %v427
        %v608 = vadd.f32 %v605, %v607
        %v609 = vstv %s281
        %v610 = vmul.f32 %v609, %v430
        %v611 = vadd.f32 %v608, %v610
        %v612 = vstv %s282
        %v613 = vmul.f32 %v612, %v433
        %v614 = vadd.f32 %v611, %v613
        %v615 = vmax.f32 %v614, 0.0
        %v616 = vstv %s372
        %v617 = vstv %s283
        %v618 = vmul.f32 %v617, %v424
        %v619 = vadd.f32 %v616, %v618
        %v620 = vstv %s284
        %v621 = vmul.f32 %v620, %v427
        %v622 = vadd.f32 %v619, %v621
        %v623 = vstv %s285
        %v624 = vmul.f32 %v623, %v430
        %v625 = vadd.f32 %v622, %v624
        %v626 = vstv %s286
        %v627 = vmul.f32 %v626, %v433
        %v628 = vadd.f32 %v625, %v627
        %v629 = vmax.f32 %v628, 0.0
        %v630 = vstv %s373
        %v631 = vstv %s287
        %v632 = vmul.f32 %v631, %v424
        %v633 = vadd.f32 %v630, %v632
        %v634 = vstv %s288
        %v635 = vmul.f32 %v634, %v427
        %v636 = vadd.f32 %v633, %v635
        %v637 = vstv %s289
        %v638 = vmul.f32 %v637, %v430
        %v639 = vadd.f32 %v636, %v638
        %v640 = vstv %s290
        %v641 = vmul.f32 %v640, %v433
        %v642 = vadd.f32 %v639, %v641
        %v643 = vmax.f32 %v642, 0.0
        %v644 = vstv %s374
        %v645 = vstv %s291
        %v646 = vmul.f32 %v645, %v424
        %v647 = vadd.f32 %v644, %v646
        %v648 = vstv %s292
        %v649 = vmul.f32 %v648, %v427
        %v650 = vadd.f32 %v647, %v649
        %v651 = vstv %s293
        %v652 = vmul.f32 %v651, %v430
        %v653 = vadd.f32 %v650, %v652
        %v654 = vstv %s294
        %v655 = vmul.f32 %v654, %v433
        %v656 = vadd.f32 %v653, %v655
        %v657 = vmax.f32 %v656, 0.0
        %v658 = vstv %s375
        %v659 = vstv %s295
        %v660 = vmul.f32 %v659, %v424
        %v661 = vadd.f32 %v658, %v660
        %v662 = vstv %s296
        %v663 = vmul.f32 %v662, %v427
        %v664 = vadd.f32 %v661, %v663
        %v665 = vstv %s297
        %v666 = vmul.f32 %v665, %v430
        %v667 = vadd.f32 %v664, %v666
        %v668 = vstv %s298
        %v669 = vmul.f32 %v668, %v433
        %v670 = vadd.f32 %v667, %v669
        %v671 = vmax.f32 %v670, 0.0
        %v672 = vstv %s376
        %v673 = vstv %s299
        %v674 = vmul.f32 %v673, %v424
        %v675 = vadd.f32 %v672, %v674
        %v676 = vstv %s300
        %v677 = vmul.f32 %v676, %v427
        %v678 = vadd.f32 %v675, %v677
        %v679 = vstv %s301
        %v680 = vmul.f32 %v679, %v430
        %v681 = vadd.f32 %v678, %v680
        %v682 = vstv %s302
        %v683 = vmul.f32 %v682, %v433
        %v684 = vadd.f32 %v681, %v683
        %v685 = vmax.f32 %v684, 0.0
        %v686 = vstv %s377
        %v687 = vstv %s303
        %v688 = vmul.f32 %v687, %v424
        %v689 = vadd.f32 %v686, %v688
        %v690 = vstv %s304
        %v691 = vmul.f32 %v690, %v427
        %v692 = vadd.f32 %v689, %v691
        %v693 = vstv %s305
        %v694 = vmul.f32 %v693, %v430
        %v695 = vadd.f32 %v692, %v694
        %v696 = vstv %s306
        %v697 = vmul.f32 %v696, %v433
        %v698 = vadd.f32 %v695, %v697
        %v699 = vmax.f32 %v698, 0.0
        %v700 = vstv %s378
        %v701 = vstv %s307
        %v702 = vmul.f32 %v701, %v424
        %v703 = vadd.f32 %v700, %v702
        %v704 = vstv %s308
        %v705 = vmul.f32 %v704, %v427
        %v706 = vadd.f32 %v703, %v705
        %v707 = vstv %s309
        %v708 = vmul.f32 %v707, %v430
        %v709 = vadd.f32 %v706, %v708
        %v710 = vstv %s310
        %v711 = vmul.f32 %v710, %v433
        %v712 = vadd.f32 %v709, %v711
        %v713 = vmax.f32 %v712, 0.0
        %v714 = vstv %s379
        %v715 = vstv %s311
        %v716 = vmul.f32 %v715, %v424
        %v717 = vadd.f32 %v714, %v716
        %v718 = vstv %s312
        %v719 = vmul.f32 %v718, %v427
        %v720 = vadd.f32 %v717, %v719
        %v721 = vstv %s313
        %v722 = vmul.f32 %v721, %v430
        %v723 = vadd.f32 %v720, %v722
        %v724 = vstv %s314
        %v725 = vmul.f32 %v724, %v433
        %v726 = vadd.f32 %v723, %v725
        %v727 = vmax.f32 %v726, 0.0
        %v728 = vstv %s380
        %v729 = vstv %s315
        %v730 = vmul.f32 %v729, %v424
        %v731 = vadd.f32 %v728, %v730
        %v732 = vstv %s316
        %v733 = vmul.f32 %v732, %v427
        %v734 = vadd.f32 %v731, %v733
        %v735 = vstv %s317
        %v736 = vmul.f32 %v735, %v430
        %v737 = vadd.f32 %v734, %v736
        %v738 = vstv %s318
        %v739 = vmul.f32 %v738, %v433
        %v740 = vadd.f32 %v737, %v739
        %v741 = vmax.f32 %v740, 0.0
        %v742 = vstv %s381
        %v743 = vstv %s319
        %v744 = vmul.f32 %v743, %v424
        %v745 = vadd.f32 %v742, %v744
        %v746 = vstv %s320
        %v747 = vmul.f32 %v746, %v427
        %v748 = vadd.f32 %v745, %v747
        %v749 = vstv %s321
        %v750 = vmul.f32 %v749, %v430
        %v751 = vadd.f32 %v748, %v750
        %v752 = vstv %s322
        %v753 = vmul.f32 %v752, %v433
        %v754 = vadd.f32 %v751, %v753
        %v755 = vmax.f32 %v754, 0.0
        %v756 = vstv %s382
        %v757 = vstv %s323
        %v758 = vmul.f32 %v757, %v424
        %v759 = vadd.f32 %v756, %v758
        %v760 = vstv %s324
        %v761 = vmul.f32 %v760, %v427
        %v762 = vadd.f32 %v759, %v761
        %v763 = vstv %s325
        %v764 = vmul.f32 %v763, %v430
        %v765 = vadd.f32 %v762, %v764
        %v766 = vstv %s326
        %v767 = vmul.f32 %v766, %v433
        %v768 = vadd.f32 %v765, %v767
        %v769 = vmax.f32 %v768, 0.0
        %v770 = vstv %s383
        %v771 = vstv %s327
        %v772 = vmul.f32 %v771, %v424
        %v773 = vadd.f32 %v770, %v772
        %v774 = vstv %s328
        %v775 = vmul.f32 %v774, %v427
        %v776 = vadd.f32 %v773, %v775
        %v777 = vstv %s329
        %v778 = vmul.f32 %v777, %v430
        %v779 = vadd.f32 %v776, %v778
        %v780 = vstv %s330
        %v781 = vmul.f32 %v780, %v433
        %v782 = vadd.f32 %v779, %v781
        %v783 = vmax.f32 %v782, 0.0
        %v784 = vstv %s384
        %v785 = vstv %s331
        %v786 = vmul.f32 %v785, %v424
        %v787 = vadd.f32 %v784, %v786
        %v788 = vstv %s332
        %v789 = vmul.f32 %v788, %v427
        %v790 = vadd.f32 %v787, %v789
        %v791 = vstv %s333
        %v792 = vmul.f32 %v791, %v430
        %v793 = vadd.f32 %v790, %v792
        %v794 = vstv %s334
        %v795 = vmul.f32 %v794, %v433
        %v796 = vadd.f32 %v793, %v795
        %v797 = vmax.f32 %v796, 0.0
        %v798 = vstv %s385
        %v799 = vstv %s335
        %v800 = vmul.f32 %v799, %v424
        %v801 = vadd.f32 %v798, %v800
        %v802 = vstv %s336
        %v803 = vmul.f32 %v802, %v427
        %v804 = vadd.f32 %v801, %v803
        %v805 = vstv %s337
        %v806 = vmul.f32 %v805, %v430
        %v807 = vadd.f32 %v804, %v806
        %v808 = vstv %s338
        %v809 = vmul.f32 %v808, %v433
        %v810 = vadd.f32 %v807, %v809
        %v811 = vmax.f32 %v810, 0.0
        %v812 = vstv %s386
        %v813 = vstv %s339
        %v814 = vmul.f32 %v813, %v424
        %v815 = vadd.f32 %v812, %v814
        %v816 = vstv %s340
        %v817 = vmul.f32 %v816, %v427
        %v818 = vadd.f32 %v815, %v817
        %v819 = vstv %s341
        %v820 = vmul.f32 %v819, %v430
        %v821 = vadd.f32 %v818, %v820
        %v822 = vstv %s342
        %v823 = vmul.f32 %v822, %v433
        %v824 = vadd.f32 %v821, %v823
        %v825 = vmax.f32 %v824, 0.0
        %v826 = vstv %s387
        %v827 = vstv %s343
        %v828 = vmul.f32 %v827, %v424
        %v829 = vadd.f32 %v826, %v828
        %v830 = vstv %s344
        %v831 = vmul.f32 %v830, %v427
        %v832 = vadd.f32 %v829, %v831
        %v833 = vstv %s345
        %v834 = vmul.f32 %v833, %v430
        %v835 = vadd.f32 %v832, %v834
        %v836 = vstv %s346
        %v837 = vmul.f32 %v836, %v433
        %v838 = vadd.f32 %v835, %v837
        %v839 = vmax.f32 %v838, 0.0
        %v840 = vstv %s388
        %v841 = vstv %s347
        %v842 = vmul.f32 %v841, %v424
        %v843 = vadd.f32 %v840, %v842
        %v844 = vstv %s348
        %v845 = vmul.f32 %v844, %v427
        %v846 = vadd.f32 %v843, %v845
        %v847 = vstv %s349
        %v848 = vmul.f32 %v847, %v430
        %v849 = vadd.f32 %v846, %v848
        %v850 = vstv %s350
        %v851 = vmul.f32 %v850, %v433
        %v852 = vadd.f32 %v849, %v851
        %v853 = vmax.f32 %v852, 0.0
        %v854 = vstv %s389
        %v855 = vstv %s351
        %v856 = vmul.f32 %v855, %v424
        %v857 = vadd.f32 %v854, %v856
        %v858 = vstv %s352
        %v859 = vmul.f32 %v858, %v427
        %v860 = vadd.f32 %v857, %v859
        %v861 = vstv %s353
        %v862 = vmul.f32 %v861, %v430
        %v863 = vadd.f32 %v860, %v862
        %v864 = vstv %s354
        %v865 = vmul.f32 %v864, %v433
        %v866 = vadd.f32 %v863, %v865
        %v867 = vmax.f32 %v866, 0.0
        %v868 = vstv %s390
        %v869 = vstv %s355
        %v870 = vmul.f32 %v869, %v424
        %v871 = vadd.f32 %v868, %v870
        %v872 = vstv %s356
        %v873 = vmul.f32 %v872, %v427
        %v874 = vadd.f32 %v871, %v873
        %v875 = vstv %s357
        %v876 = vmul.f32 %v875, %v430
        %v877 = vadd.f32 %v874, %v876
        %v878 = vstv %s358
        %v879 = vmul.f32 %v878, %v433
        %v880 = vadd.f32 %v877, %v879
        %v881 = vmax.f32 %v880, 0.0
        %v882 = vstv %s423
        %v883 = vstv %s391
        %v884 = vmul.f32 %v883, %v447
        %v885 = vadd.f32 %v882, %v884
        %v886 = vstv %s392
        %v887 = vmul.f32 %v886, %v461
        %v888 = vadd.f32 %v885, %v887
        %v889 = vstv %s393
        %v890 = vmul.f32 %v889, %v475
        %v891 = vadd.f32 %v888, %v890
        %v892 = vstv %s394
        %v893 = vmul.f32 %v892, %v489
        %v894 = vadd.f32 %v891, %v893
        %v895 = vstv %s395
        %v896 = vmul.f32 %v895, %v503
        %v897 = vadd.f32 %v894, %v896
        %v898 = vstv %s396
        %v899 = vmul.f32 %v898, %v517
        %v900 = vadd.f32 %v897, %v899
        %v901 = vstv %s397
        %v902 = vmul.f32 %v901, %v531
        %v903 = vadd.f32 %v900, %v902
        %v904 = vstv %s398
        %v905 = vmul.f32 %v904, %v545
        %v906 = vadd.f32 %v903, %v905
        %v907 = vstv %s399
        %v908 = vmul.f32 %v907, %v559
        %v909 = vadd.f32 %v906, %v908
        %v910 = vstv %s400
        %v911 = vmul.f32 %v910, %v573
        %v912 = vadd.f32 %v909, %v911
        %v913 = vstv %s401
        %v914 = vmul.f32 %v913, %v587
        %v915 = vadd.f32 %v912, %v914
        %v916 = vstv %s402
        %v917 = vmul.f32 %v916, %v601
        %v918 = vadd.f32 %v915, %v917
        %v919 = vstv %s403
        %v920 = vmul.f32 %v919, %v615
        %v921 = vadd.f32 %v918, %v920
        %v922 = vstv %s404
        %v923 = vmul.f32 %v922, %v629
        %v924 = vadd.f32 %v921, %v923
        %v925 = vstv %s405
        %v926 = vmul.f32 %v925, %v643
        %v927 = vadd.f32 %v924, %v926
        %v928 = vstv %s406
        %v929 = vmul.f32 %v928, %v657
        %v930 = vadd.f32 %v927, %v929
        %v931 = vstv %s407
        %v932 = vmul.f32 %v931, %v671
        %v933 = vadd.f32 %v930, %v932
        %v934 = vstv %s408
        %v935 = vmul.f32 %v934, %v685
        %v936 = vadd.f32 %v933, %v935
        %v937 = vstv %s409
        %v938 = vmul.f32 %v937, %v699
        %v939 = vadd.f32 %v936, %v938
        %v940 = vstv %s410
        %v941 = vmul.f32 %v940, %v713
        %v942 = vadd.f32 %v939, %v941
        %v943 = vstv %s411
        %v944 = vmul.f32 %v943, %v727
        %v945 = vadd.f32 %v942, %v944
        %v946 = vstv %s412
        %v947 = vmul.f32 %v946, %v741
        %v948 = vadd.f32 %v945, %v947
        %v949 = vstv %s413
        %v950 = vmul.f32 %v949, %v755
        %v951 = vadd.f32 %v948, %v950
        %v952 = vstv %s414
        %v953 = vmul.f32 %v952, %v769
        %v954 = vadd.f32 %v951, %v953
        %v955 = vstv %s415
        %v956 = vmul.f32 %v955, %v783
        %v957 = vadd.f32 %v954, %v956
        %v958 = vstv %s416
        %v959 = vmul.f32 %v958, %v797
        %v960 = vadd.f32 %v957, %v959
        %v961 = vstv %s417
        %v962 = vmul.f32 %v961, %v811
        %v963 = vadd.f32 %v960, %v962
        %v964 = vstv %s418
        %v965 = vmul.f32 %v964, %v825
        %v966 = vadd.f32 %v963, %v965
        %v967 = vstv %s419
        %v968 = vmul.f32 %v967, %v839
        %v969 = vadd.f32 %v966, %v968
        %v970 = vstv %s420
        %v971 = vmul.f32 %v970, %v853
        %v972 = vadd.f32 %v969, %v971
        %v973 = vstv %s421
        %v974 = vmul.f32 %v973, %v867
        %v975 = vadd.f32 %v972, %v974
        %v976 = vstv %s422
        %v977 = vmul.f32 %v976, %v881
        %v978 = vadd.f32 %v975, %v977
        %979 = vst [vmem:[%s230] sm:$0xff] %v978
        %s980 = sand.u32 %s114, 1
        %s981 = scalar_lea.sflag [#allocation4], %s980
        %s982 = sand.u32 %s114, 1
        %s983 = smul.addr %s982, 8
        %s984 = scalar_lea.vmem [#allocation9], %s983
        // Predicated region
        $region45: #{tpu_custom_call.1} parent=31 // pred_check
          %p985 = pneg %p124
        $region46: #{tpu_custom_call.1} parent=31 // pred_check_branch
          %987 = sbr.rel (%p985) target = $region48
        $region47: #{tpu_custom_call.1} parent=31 // pred_region
          %s989 = ssub.s32 128, 128
          %990 = vsyncadd %s981, %s989
          %s991 = sadd.s32 %s27, %s26
          %s992 = smul.addr %s991, 128
          %s993 = scalar_lea.hbm %s3, %s992
          %s995 = sshll.u32 %s984, 4
          %s996 = int_to_ptr.vmem [resolvable:$true] %s995
          %998 = dma.vmem_to_hbm [thread:$0]  %s996, 128, %s993, %s981
        $region48: #{tpu_custom_call.1} parent=31 // pred_fallthru
          _
      $region32: #{tpu_custom_call.1} parent=5 // pred_fallthru
        _
      %p999 = scmp.le.s32.totalorder 2, %s17
      // Predicated region
      $region49: #{tpu_custom_call.1} parent=5 // pred_check
        %p1000 = pneg %p999
      $region50: #{tpu_custom_call.1} parent=5 // pred_check_branch
        %1002 = sbr.rel (%p1000) target = $region52
      $region51: #{tpu_custom_call.1} parent=5 // pred_region
        %s1003 = ssub.s32 %s17, 2
        // Predicated region
        $region53: #{tpu_custom_call.1} parent=51 // pred_check
          %p1004 = pneg %p130
        $region54: #{tpu_custom_call.1} parent=51 // pred_check_branch
          %1006 = sbr.rel (%p1004) target = $region56
        $region55: #{tpu_custom_call.1} parent=51 // pred_region
          %s1007 = sand.u32 %s115, 1
          %s1008 = scalar_lea.sflag [#allocation4], %s1007
          %s1009 = sand.u32 %s115, 1
          %s1010 = smul.addr %s1009, 8
          %s1011 = scalar_lea.vmem [#allocation9], %s1010
          %1012 = dma.done %s1008, 128
        $region56: #{tpu_custom_call.1} parent=51 // pred_fallthru
          _
      $region52: #{tpu_custom_call.1} parent=5 // pred_fallthru
        _
    $region6: #{tpu_custom_call.1} parent=1 // loop_footer
      %s21 = sadd.s32 1, %s17
    $region7: #{tpu_custom_call.1} parent=1 // loop_footer_branch
      %16 = sbr.rel target = $region3
    $region8: #{tpu_custom_call.1} parent=1 // loop_exit
      _
    %1013 = vsyncpa [#allocation3], 1
    %s1014 = scalar_lea.sflag [#allocation3], 1
    %1015 = vsyncpa %s1014, 1
    %1016 = vsyncpa [#allocation4], 1
    %s1017 = scalar_lea.sflag [#allocation4], 1
    %1018 = vsyncpa %s1017, 1
    %1019 = vsyncpa [#allocation5], 1
    %s1020 = scalar_lea.sflag [#allocation5], 1
    %1021 = vsyncpa %s1020, 1
    %1022 = vsyncpa [#allocation6], 1
    %s1023 = scalar_lea.sflag [#allocation6], 1
    %1024 = vsyncpa %s1023, 1

</llo_original>
